<compile_context>
chip_gen: v7x
topology: tpu7x:2x2x1
jax: 0.10.0
libtpu: 0.0.40
codegen_flags: <defaults>
</compile_context>

<pallas_src>
import jax
import jax.numpy as jnp
from jax import lax
from jax.experimental import pallas as pl
from jax.experimental.pallas import tpu as pltpu


def _round_up(x, m):
    return (x + m - 1) // m * m


def rnn_encoder_kernel(x_ref, wih_ref, whh_ref, b_ref, userT_ref, itemT_ref,
                       len_ref, pred_ref, h_ref, c_ref, last_ref):
    # x_ref    : (T_CHUNK, B, Ep)   streamed timestep chunk
    # wih_ref  : (Ep, 4*Hp)         fused+padded input weights  [i|f|g|o]
    # whh_ref  : (Hp, 4*Hp)         fused+padded hidden weights [i|f|g|o]
    # b_ref    : (1, 4*Hp)          fused bias (b_ih + b_hh), zero-padded
    # userT_ref: (E, B)             user embeddings, pre-transposed
    # itemT_ref: (E, B)             item embeddings, pre-transposed
    # len_ref  : (B, 1) int32       sequence lengths
    # pred_ref : (1, B)             output
    # h/c/last : (B, Hp) f32        persistent scratch across grid steps
    t_chunk, _, _ = x_ref.shape
    Hp = whh_ref.shape[0]
    H = userT_ref.shape[0]            # original hidden size (B == E == H)

    t0 = pl.program_id(0)

    @pl.when(t0 == 0)
    def _init():
        h_ref[...] = jnp.zeros_like(h_ref)
        c_ref[...] = jnp.zeros_like(c_ref)
        last_ref[...] = jnp.zeros_like(last_ref)

    # Hoist loads of loop-invariant operands out of the unrolled time loop.
    wih = wih_ref[...]
    whh = whh_ref[...]
    bias = b_ref[...]                 # (1, 4*Hp): single broadcast-add per step
    len_m1 = len_ref[...] - 1         # (B, 1)
    base_t = t0 * t_chunk

    def step(t, carry):
        x_t = x_ref[t]                                        # (B, Ep)
        h_prev = h_ref[...]                                   # (B, Hp) f32

        # One fused gate matrix per operand: (B, 4*Hp), f32 accumulation.
        gates = (jnp.dot(x_t, wih, preferred_element_type=jnp.float32)
                 + jnp.dot(h_prev.astype(whh.dtype), whh,
                           preferred_element_type=jnp.float32)
                 + bias)

        i_g = jax.nn.sigmoid(gates[:, 0 * Hp:1 * Hp])
        f_g = jax.nn.sigmoid(gates[:, 1 * Hp:2 * Hp])
        g_g = jnp.tanh(gates[:, 2 * Hp:3 * Hp])
        o_g = jax.nn.sigmoid(gates[:, 3 * Hp:4 * Hp])

        c_new = f_g * c_ref[...] + i_g * g_g
        h_new = o_g * jnp.tanh(c_new)
        c_ref[...] = c_new
        h_ref[...] = h_new

        # record r_out[b, item_len[b] - 1, :]
        is_last = len_m1 == (base_t + t)                      # (B, 1)
        last_ref[...] = jnp.where(is_last, h_new, last_ref[...])
        return carry

    lax.fori_loop(0, t_chunk, step, 0, unroll=True)

    @pl.when(t0 == pl.num_programs(0) - 1)
    def _epilogue():
        uT = userT_ref[...]                                   # (E, B), uT[j,b]=user[b,j]
        iT = itemT_ref[...]                                   # (E, B)
        lastv = last_ref[:, :H]                               # (B, H) == (E, B) shape
        # pred[b] = sum_j user[b,j]*last_h[j,b] + sum_j item[b,j]*user[b,j]
        # Elementwise (VPU) + sublane reduce (XLU); no MXU in the epilogue.
        pred_ref[...] = jnp.sum(uT * lastv + iT * uT, axis=0, keepdims=True)


def prepare_params(params, compute_dtype=jnp.float32):
    """One-time parameter preprocessing (hoisted out of the per-call path).

    Fuses the 4 LSTM gates into single (Ep, 4*Hp)/(Hp, 4*Hp) weight matrices
    with the gate axis padded so 4*Hp is a multiple of 128 (lane-dense), folds
    b_ih + b_hh into one (1, 4*Hp) row, and pads E to a multiple of 128.
    Set compute_dtype=jnp.bfloat16 on v6e/v7x for production shapes
    (f32 accumulation is kept inside the kernel either way).
    """
    w_ih, w_hh = params["w_ih"], params["w_hh"]
    b = params["b_ih"] + params["b_hh"]
    H = w_hh.shape[1]
    E = w_ih.shape[1]
    Hp = _round_up(H, 32)             # 4*Hp % 128 == 0
    Ep = _round_up(E, 128)

    def pad2(a, rows, cols):
        return jnp.pad(a, ((0, rows - a.shape[0]), (0, cols - a.shape[1])))

    wih_cat = jnp.concatenate(
        [pad2(w_ih[k * H:(k + 1) * H, :].T, Ep, Hp) for k in range(4)], axis=1)
    whh_cat = jnp.concatenate(
        [pad2(w_hh[k * H:(k + 1) * H, :].T, Hp, Hp) for k in range(4)], axis=1)
    b_cat = jnp.concatenate(
        [jnp.pad(b[k * H:(k + 1) * H], (0, Hp - H)) for k in range(4)]
    ).reshape(1, 4 * Hp)

    return {
        "user_emb": params["user_emb"].astype(jnp.float32),
        "item_emb": params["item_emb"].astype(jnp.float32),
        "wrd_emb": params["wrd_emb"].astype(jnp.float32),
        "w_ih_cat": wih_cat.astype(compute_dtype),
        "w_hh_cat": whh_cat.astype(compute_dtype),
        "b_cat": b_cat.astype(jnp.float32),
        "H": H, "E": E, "Hp": Hp, "Ep": Ep,
        "compute_dtype": compute_dtype,
    }


def rnn_encoder_forward(users, items, item_ctx, item_len, prep, t_chunk=8):
    B, T = item_ctx.shape
    E, H, Ep, Hp = prep["E"], prep["H"], prep["Ep"], prep["Hp"]
    cdt = prep["compute_dtype"]
    assert B == E == H, "literal torch.stack(dim=1) semantics require B == E == H"

    # Glue: embedding gathers in plain JAX; user/item pre-transposed so the
    # kernel epilogue is purely elementwise + a sublane reduce.
    emb_user = jnp.take(prep["user_emb"], users, axis=0)       # (B, E)
    emb_item = jnp.take(prep["item_emb"], items, axis=0)       # (B, E)
    emb_ctx = jnp.take(prep["wrd_emb"], item_ctx, axis=0)      # (B, T, E)
    userT = emb_user.T                                         # (E, B)
    itemT = emb_item.T                                         # (E, B)

    t_chunk = max(1, min(t_chunk, T))
    Tp = _round_up(T, t_chunk)
    # Time-major, zero-padded in T (extra steps can't overwrite `last` since
    # all lengths <= T) and in E (zero weights for padded columns).
    x = jnp.transpose(emb_ctx, (1, 0, 2))                      # (T, B, E)
    x = jnp.pad(x, ((0, Tp - T), (0, 0), (0, Ep - E))).astype(cdt)

    lens = item_len.astype(jnp.int32).reshape(B, 1)
    n_steps = Tp // t_chunk

    def full(shape):
        return pl.BlockSpec(shape, lambda t, _n=len(shape): (0,) * _n)

    # NOTE: (1, B) output store is masked at B < 128; at production sizes the
    # module's own B == E == H constraint makes B a multiple of 128 anyway.
    pred = pl.pallas_call(
        rnn_encoder_kernel,
        out_shape=jax.ShapeDtypeStruct((1, B), jnp.float32),
        grid=(n_steps,),
        in_specs=[
            pl.BlockSpec((t_chunk, B, Ep), lambda t: (t, 0, 0)),   # x streamed over T
            full((Ep, 4 * Hp)),                                    # w_ih_cat (resident)
            full((Hp, 4 * Hp)),                                    # w_hh_cat (resident)
            full((1, 4 * Hp)),                                     # bias
            full((E, B)),                                          # user^T
            full((E, B)),                                          # item^T
            full((B, 1)),                                          # lengths
        ],
        out_specs=pl.BlockSpec((1, B), lambda t: (0, 0)),
        scratch_shapes=[pltpu.VMEM((B, Hp), jnp.float32),   # h
                        pltpu.VMEM((B, Hp), jnp.float32),   # c
                        pltpu.VMEM((B, Hp), jnp.float32)],  # last hidden per batch
        compiler_params=pltpu.CompilerParams(
            dimension_semantics=("arbitrary",),
            vmem_limit_bytes=64 * 1024 * 1024),
    )(x, prep["w_ih_cat"], prep["w_hh_cat"], prep["b_cat"], userT, itemT, lens)
    return pred.reshape(B)


def reference_forward(users, items, item_ctx, item_len, params):
    """Pure-JAX reference matching the torch module literally."""
    user_tab, item_tab, wrd_tab = params["user_emb"], params["item_emb"], params["wrd_emb"]
    w_ih, w_hh, b_ih, b_hh = params["w_ih"], params["w_hh"], params["b_ih"], params["b_hh"]
    B, T = item_ctx.shape
    H = w_hh.shape[1]

    emb_user = jnp.take(user_tab, users, axis=0)
    emb_item = jnp.take(item_tab, items, axis=0)
    emb_ctx = jnp.take(wrd_tab, item_ctx, axis=0)              # (B, T, E)

    def step(carry, x_t):
        h, c = carry
        gates = x_t @ w_ih.T + b_ih + h @ w_hh.T + b_hh
        i, f, g, o = jnp.split(gates, 4, axis=-1)
        i, f, o = jax.nn.sigmoid(i), jax.nn.sigmoid(f), jax.nn.sigmoid(o)
        g = jnp.tanh(g)
        c = f * c + i * g
        h = o * jnp.tanh(c)
        return (h, c), h

    init = (jnp.zeros((B, H), jnp.float32), jnp.zeros((B, H), jnp.float32))
    _, hs = lax.scan(step, init, jnp.transpose(emb_ctx, (1, 0, 2)))
    r_out = jnp.transpose(hs, (1, 0, 2))                       # (B, T, H)
    last = r_out[jnp.arange(B), item_len - 1, :]               # (B, H)
    ctx_feature = last.T                                       # (H, B) — torch.stack(dim=1)
    pred = jnp.sum(emb_user * ctx_feature, axis=1) + jnp.sum(emb_item * emb_user, axis=1)
    return pred


if __name__ == "__main__":
    # Small shapes consistent with the module (B == embedding_dim == n_hidden
    # is required by the original forward's broadcasting, see note above).
    B = 8           # batch
    T = 8           # sequence length
    E = 8           # embedding_dim == n_feature
    H = 8           # n_hidden
    vocab_size, user_size, item_size = 50, 20, 30

    key = jax.random.PRNGKey(0)
    ks = jax.random.split(key, 10)
    bound = 1.0 / jnp.sqrt(jnp.float32(H))

    wrd_emb = jax.random.normal(ks[0], (vocab_size + 1, E), jnp.float32) * 0.1
    wrd_emb = wrd_emb.at[0].set(0.0)                           # padding_idx = 0
    params = {
        "user_emb": jax.random.normal(ks[1], (user_size, E), jnp.float32) * 0.1,
        "item_emb": jax.random.normal(ks[2], (item_size, E), jnp.float32) * 0.1,
        "wrd_emb": wrd_emb,
        "w_ih": jax.random.uniform(ks[3], (4 * H, E), jnp.float32, -bound, bound),
        "w_hh": jax.random.uniform(ks[4], (4 * H, H), jnp.float32, -bound, bound),
        "b_ih": jax.random.uniform(ks[5], (4 * H,), jnp.float32, -bound, bound),
        "b_hh": jax.random.uniform(ks[6], (4 * H,), jnp.float32, -bound, bound),
    }

    users = jax.random.randint(ks[7], (B,), 0, user_size, jnp.int32)
    items = jax.random.randint(ks[8], (B,), 0, item_size, jnp.int32)
    item_ctx = jax.random.randint(ks[9], (B, T), 1, vocab_size + 1, jnp.int32)
    item_len = jnp.array([T, 3, 5, 1, T - 1, 2, 6, 4], jnp.int32)   # lengths in [1, T]
    # zero-pad tokens past each sequence's length (padding_idx behaviour)
    pos = jnp.arange(T)[None, :]
    item_ctx = jnp.where(pos < item_len[:, None], item_ctx, 0)

    # One-time parameter preprocessing (keep f32 here so the tolerance check
    # against the f32 reference is tight; use bfloat16 on v6e/v7x in prod).
    prep = prepare_params(params, compute_dtype=jnp.float32)

    pred = rnn_encoder_forward(users, items, item_ctx, item_len, prep)
    pred = jax.block_until_ready(pred)

    ref = reference_forward(users, items, item_ctx, item_len, params)
    assert pred.shape == (B,)
    assert jnp.allclose(pred, ref, atol=1e-4, rtol=1e-4), (pred, ref)
    print("KERNEL_OK")
</pallas_src>

<mosaic_0001>
module attributes {stable_mosaic.version = 11 : i64} {
  func.func @rnn_encoder_kernel(%arg0: i32, %arg1: memref<8x8x128xf32, #tpu.memory_space<vmem>>, %arg2: memref<128x128xf32, #tpu.memory_space<vmem>>, %arg3: memref<32x128xf32, #tpu.memory_space<vmem>>, %arg4: memref<1x128xf32, #tpu.memory_space<vmem>>, %arg5: memref<8x8xf32, #tpu.memory_space<vmem>>, %arg6: memref<8x8xf32, #tpu.memory_space<vmem>>, %arg7: memref<8x1xi32, #tpu.memory_space<vmem>>, %arg8: memref<1x8xf32, #tpu.memory_space<vmem>>, %arg9: memref<8x32xf32, #tpu.memory_space<vmem>>, %arg10: memref<8x32xf32, #tpu.memory_space<vmem>>, %arg11: memref<8x32xf32, #tpu.memory_space<vmem>>) attributes {dimension_semantics = [#tpu.dimension_semantics<arbitrary>], iteration_bounds = array<i64: 1>, scalar_prefetch = 0 : i64, scratch_operands = 3 : i64, tpu.core_type = #tpu.core_type<tc>, window_params = [{transform_indices = @transform_0, window_bounds = array<i64: 8, 8, 128>}, {pipeline_mode = #tpu.pipeline_mode<synchronous>, transform_indices = @transform_1, window_bounds = array<i64: 128, 128>}, {pipeline_mode = #tpu.pipeline_mode<synchronous>, transform_indices = @transform_2, window_bounds = array<i64: 32, 128>}, {pipeline_mode = #tpu.pipeline_mode<synchronous>, transform_indices = @transform_3, window_bounds = array<i64: 1, 128>}, {pipeline_mode = #tpu.pipeline_mode<synchronous>, transform_indices = @transform_4, window_bounds = array<i64: 8, 8>}, {pipeline_mode = #tpu.pipeline_mode<synchronous>, transform_indices = @transform_5, window_bounds = array<i64: 8, 8>}, {pipeline_mode = #tpu.pipeline_mode<synchronous>, transform_indices = @transform_6, window_bounds = array<i64: 8, 1>}, {pipeline_mode = #tpu.pipeline_mode<synchronous>, transform_indices = @transform_7, window_bounds = array<i64: 1, 8>}]} {
    %c0_i32 = arith.constant 0 : i32
    %0 = arith.cmpi eq, %arg0, %c0_i32 : i32
    %1 = arith.extui %0 : i1 to i32
    %c0_i32_0 = arith.constant 0 : i32
    %2 = arith.cmpi ne, %1, %c0_i32_0 : i32
    scf.if %2 {
      %cst_164 = arith.constant 0.000000e+00 : f32
      %373 = vector.broadcast %cst_164 : f32 to vector<8x32xf32>
      %c0_165 = arith.constant 0 : index
      %c0_166 = arith.constant 0 : index
      %374 = vector.load %arg9[%c0_165, %c0_166] : memref<8x32xf32, #tpu.memory_space<vmem>>, vector<8x32xf32>
      tpu.vector_store %arg9[%c0_165, %c0_166], %373 {strides = array<i32>} : memref<8x32xf32, #tpu.memory_space<vmem>>, vector<8x32xf32>,
      %cst_167 = arith.constant 0.000000e+00 : f32
      %375 = vector.broadcast %cst_167 : f32 to vector<8x32xf32>
      %c0_168 = arith.constant 0 : index
      %c0_169 = arith.constant 0 : index
      %376 = vector.load %arg10[%c0_168, %c0_169] : memref<8x32xf32, #tpu.memory_space<vmem>>, vector<8x32xf32>
      tpu.vector_store %arg10[%c0_168, %c0_169], %375 {strides = array<i32>} : memref<8x32xf32, #tpu.memory_space<vmem>>, vector<8x32xf32>,
      %cst_170 = arith.constant 0.000000e+00 : f32
      %377 = vector.broadcast %cst_170 : f32 to vector<8x32xf32>
      %c0_171 = arith.constant 0 : index
      %c0_172 = arith.constant 0 : index
      %378 = vector.load %arg11[%c0_171, %c0_172] : memref<8x32xf32, #tpu.memory_space<vmem>>, vector<8x32xf32>
      tpu.vector_store %arg11[%c0_171, %c0_172], %377 {strides = array<i32>} : memref<8x32xf32, #tpu.memory_space<vmem>>, vector<8x32xf32>,
    } else {
    }
    %c0 = arith.constant 0 : index
    %c0_1 = arith.constant 0 : index
    %3 = vector.load %arg2[%c0, %c0_1] : memref<128x128xf32, #tpu.memory_space<vmem>>, vector<128x128xf32>
    %c0_2 = arith.constant 0 : index
    %c0_3 = arith.constant 0 : index
    %4 = vector.load %arg3[%c0_2, %c0_3] : memref<32x128xf32, #tpu.memory_space<vmem>>, vector<32x128xf32>
    %c0_4 = arith.constant 0 : index
    %c0_5 = arith.constant 0 : index
    %5 = vector.load %arg4[%c0_4, %c0_5] : memref<1x128xf32, #tpu.memory_space<vmem>>, vector<1x128xf32>
    %c0_6 = arith.constant 0 : index
    %c0_7 = arith.constant 0 : index
    %6 = vector.load %arg7[%c0_6, %c0_7] : memref<8x1xi32, #tpu.memory_space<vmem>>, vector<8x1xi32>
    %c1_i32 = arith.constant 1 : i32
    %7 = vector.broadcast %c1_i32 : i32 to vector<8x1xi32>
    %8 = arith.subi %6, %7 : vector<8x1xi32>
    %c8_i32 = arith.constant 8 : i32
    %9 = arith.muli %arg0, %c8_i32 : i32
    %c0_i32_8 = arith.constant 0 : i32
    %10 = arith.index_cast %c0_i32_8 : i32 to index
    %c0_9 = arith.constant 0 : index
    %c0_10 = arith.constant 0 : index
    %11 = vector.load %arg1[%10, %c0_9, %c0_10] : memref<8x8x128xf32, #tpu.memory_space<vmem>>, vector<1x8x128xf32>
    %12 = vector.shape_cast %11 : vector<1x8x128xf32> to vector<8x128xf32>
    %c0_11 = arith.constant 0 : index
    %c0_12 = arith.constant 0 : index
    %13 = vector.load %arg9[%c0_11, %c0_12] : memref<8x32xf32, #tpu.memory_space<vmem>>, vector<8x32xf32>
    %cst = arith.constant dense<0.000000e+00> : vector<8x128xf32>
    %14 = tpu.matmul %12, %3, %cst {dimension_numbers = #tpu.dot_dimension_numbers<[1], [0], [0], [1], [0, 0, 1, 1], [], []>} : vector<8x128xf32>, vector<128x128xf32>, vector<8x128xf32> -> vector<8x128xf32>
    %cst_13 = arith.constant dense<0.000000e+00> : vector<8x128xf32>
    %15 = tpu.matmul %13, %4, %cst_13 {dimension_numbers = #tpu.dot_dimension_numbers<[1], [0], [0], [1], [0, 0, 1, 1], [], []>} : vector<8x32xf32>, vector<32x128xf32>, vector<8x128xf32> -> vector<8x128xf32>
    %16 = arith.addf %14, %15 : vector<8x128xf32>
    %17 = vector.broadcast %5 : vector<1x128xf32> to vector<8x128xf32>
    %18 = arith.addf %16, %17 : vector<8x128xf32>
    %19 = vector.extract_strided_slice %18 {offsets = [0, 0], sizes = [8, 32], strides = [1, 1]} : vector<8x128xf32> to vector<8x32xf32>
    %20 = arith.negf %19 : vector<8x32xf32>
    %21 = math.exp %20 : vector<8x32xf32>
    %cst_14 = arith.constant 1.000000e+00 : f32
    %22 = vector.broadcast %cst_14 : f32 to vector<8x32xf32>
    %23 = arith.addf %22, %21 : vector<8x32xf32>
    %24 = arith.divf %22, %23 : vector<8x32xf32>
    %25 = vector.extract_strided_slice %18 {offsets = [0, 32], sizes = [8, 32], strides = [1, 1]} : vector<8x128xf32> to vector<8x32xf32>
    %26 = arith.negf %25 : vector<8x32xf32>
    %27 = math.exp %26 : vector<8x32xf32>
    %cst_15 = arith.constant 1.000000e+00 : f32
    %28 = vector.broadcast %cst_15 : f32 to vector<8x32xf32>
    %29 = arith.addf %28, %27 : vector<8x32xf32>
    %30 = arith.divf %28, %29 : vector<8x32xf32>
    %31 = vector.extract_strided_slice %18 {offsets = [0, 64], sizes = [8, 32], strides = [1, 1]} : vector<8x128xf32> to vector<8x32xf32>
    %32 = math.tanh %31 : vector<8x32xf32>
    %33 = vector.extract_strided_slice %18 {offsets = [0, 96], sizes = [8, 32], strides = [1, 1]} : vector<8x128xf32> to vector<8x32xf32>
    %34 = arith.negf %33 : vector<8x32xf32>
    %35 = math.exp %34 : vector<8x32xf32>
    %cst_16 = arith.constant 1.000000e+00 : f32
    %36 = vector.broadcast %cst_16 : f32 to vector<8x32xf32>
    %37 = arith.addf %36, %35 : vector<8x32xf32>
    %38 = arith.divf %36, %37 : vector<8x32xf32>
    %c0_17 = arith.constant 0 : index
    %c0_18 = arith.constant 0 : index
    %39 = vector.load %arg10[%c0_17, %c0_18] : memref<8x32xf32, #tpu.memory_space<vmem>>, vector<8x32xf32>
    %40 = arith.mulf %30, %39 : vector<8x32xf32>
    %41 = arith.mulf %24, %32 : vector<8x32xf32>
    %42 = arith.addf %40, %41 : vector<8x32xf32>
    %43 = math.tanh %42 : vector<8x32xf32>
    %44 = arith.mulf %38, %43 : vector<8x32xf32>
    %c0_19 = arith.constant 0 : index
    %c0_20 = arith.constant 0 : index
    %45 = vector.load %arg10[%c0_19, %c0_20] : memref<8x32xf32, #tpu.memory_space<vmem>>, vector<8x32xf32>
    tpu.vector_store %arg10[%c0_19, %c0_20], %42 {strides = array<i32>} : memref<8x32xf32, #tpu.memory_space<vmem>>, vector<8x32xf32>,
    %c0_21 = arith.constant 0 : index
    %c0_22 = arith.constant 0 : index
    %46 = vector.load %arg9[%c0_21, %c0_22] : memref<8x32xf32, #tpu.memory_space<vmem>>, vector<8x32xf32>
    tpu.vector_store %arg9[%c0_21, %c0_22], %44 {strides = array<i32>} : memref<8x32xf32, #tpu.memory_space<vmem>>, vector<8x32xf32>,
    %47 = arith.addi %9, %c0_i32_8 : i32
    %48 = vector.broadcast %47 : i32 to vector<8x1xi32>
    %49 = arith.cmpi eq, %8, %48 : vector<8x1xi32>
    %c0_23 = arith.constant 0 : index
    %c0_24 = arith.constant 0 : index
    %50 = vector.load %arg11[%c0_23, %c0_24] : memref<8x32xf32, #tpu.memory_space<vmem>>, vector<8x32xf32>
    %51 = vector.shape_cast %49 : vector<8x1xi1> to vector<8x1xi1>
    %52 = vector.broadcast %51 : vector<8x1xi1> to vector<8x32xi1>
    %53 = arith.select %52, %44, %50 : vector<8x32xi1>, vector<8x32xf32>
    %c0_25 = arith.constant 0 : index
    %c0_26 = arith.constant 0 : index
    %54 = vector.load %arg11[%c0_25, %c0_26] : memref<8x32xf32, #tpu.memory_space<vmem>>, vector<8x32xf32>
    tpu.vector_store %arg11[%c0_25, %c0_26], %53 {strides = array<i32>} : memref<8x32xf32, #tpu.memory_space<vmem>>, vector<8x32xf32>,
    %c1_i32_27 = arith.constant 1 : i32
    %55 = arith.index_cast %c1_i32_27 : i32 to index
    %c0_28 = arith.constant 0 : index
    %c0_29 = arith.constant 0 : index
    %56 = vector.load %arg1[%55, %c0_28, %c0_29] : memref<8x8x128xf32, #tpu.memory_space<vmem>>, vector<1x8x128xf32>
    %57 = vector.shape_cast %56 : vector<1x8x128xf32> to vector<8x128xf32>
    %c0_30 = arith.constant 0 : index
    %c0_31 = arith.constant 0 : index
    %58 = vector.load %arg9[%c0_30, %c0_31] : memref<8x32xf32, #tpu.memory_space<vmem>>, vector<8x32xf32>
    %cst_32 = arith.constant dense<0.000000e+00> : vector<8x128xf32>
    %59 = tpu.matmul %57, %3, %cst_32 {dimension_numbers = #tpu.dot_dimension_numbers<[1], [0], [0], [1], [0, 0, 1, 1], [], []>} : vector<8x128xf32>, vector<128x128xf32>, vector<8x128xf32> -> vector<8x128xf32>
    %cst_33 = arith.constant dense<0.000000e+00> : vector<8x128xf32>
    %60 = tpu.matmul %58, %4, %cst_33 {dimension_numbers = #tpu.dot_dimension_numbers<[1], [0], [0], [1], [0, 0, 1, 1], [], []>} : vector<8x32xf32>, vector<32x128xf32>, vector<8x128xf32> -> vector<8x128xf32>
    %61 = arith.addf %59, %60 : vector<8x128xf32>
    %62 = vector.broadcast %5 : vector<1x128xf32> to vector<8x128xf32>
    %63 = arith.addf %61, %62 : vector<8x128xf32>
    %64 = vector.extract_strided_slice %63 {offsets = [0, 0], sizes = [8, 32], strides = [1, 1]} : vector<8x128xf32> to vector<8x32xf32>
    %65 = arith.negf %64 : vector<8x32xf32>
    %66 = math.exp %65 : vector<8x32xf32>
    %cst_34 = arith.constant 1.000000e+00 : f32
    %67 = vector.broadcast %cst_34 : f32 to vector<8x32xf32>
    %68 = arith.addf %67, %66 : vector<8x32xf32>
    %69 = arith.divf %67, %68 : vector<8x32xf32>
    %70 = vector.extract_strided_slice %63 {offsets = [0, 32], sizes = [8, 32], strides = [1, 1]} : vector<8x128xf32> to vector<8x32xf32>
    %71 = arith.negf %70 : vector<8x32xf32>
    %72 = math.exp %71 : vector<8x32xf32>
    %cst_35 = arith.constant 1.000000e+00 : f32
    %73 = vector.broadcast %cst_35 : f32 to vector<8x32xf32>
    %74 = arith.addf %73, %72 : vector<8x32xf32>
    %75 = arith.divf %73, %74 : vector<8x32xf32>
    %76 = vector.extract_strided_slice %63 {offsets = [0, 64], sizes = [8, 32], strides = [1, 1]} : vector<8x128xf32> to vector<8x32xf32>
    %77 = math.tanh %76 : vector<8x32xf32>
    %78 = vector.extract_strided_slice %63 {offsets = [0, 96], sizes = [8, 32], strides = [1, 1]} : vector<8x128xf32> to vector<8x32xf32>
    %79 = arith.negf %78 : vector<8x32xf32>
    %80 = math.exp %79 : vector<8x32xf32>
    %cst_36 = arith.constant 1.000000e+00 : f32
    %81 = vector.broadcast %cst_36 : f32 to vector<8x32xf32>
    %82 = arith.addf %81, %80 : vector<8x32xf32>
    %83 = arith.divf %81, %82 : vector<8x32xf32>
    %c0_37 = arith.constant 0 : index
    %c0_38 = arith.constant 0 : index
    %84 = vector.load %arg10[%c0_37, %c0_38] : memref<8x32xf32, #tpu.memory_space<vmem>>, vector<8x32xf32>
    %85 = arith.mulf %75, %84 : vector<8x32xf32>
    %86 = arith.mulf %69, %77 : vector<8x32xf32>
    %87 = arith.addf %85, %86 : vector<8x32xf32>
    %88 = math.tanh %87 : vector<8x32xf32>
    %89 = arith.mulf %83, %88 : vector<8x32xf32>
    %c0_39 = arith.constant 0 : index
    %c0_40 = arith.constant 0 : index
    %90 = vector.load %arg10[%c0_39, %c0_40] : memref<8x32xf32, #tpu.memory_space<vmem>>, vector<8x32xf32>
    tpu.vector_store %arg10[%c0_39, %c0_40], %87 {strides = array<i32>} : memref<8x32xf32, #tpu.memory_space<vmem>>, vector<8x32xf32>,
    %c0_41 = arith.constant 0 : index
    %c0_42 = arith.constant 0 : index
    %91 = vector.load %arg9[%c0_41, %c0_42] : memref<8x32xf32, #tpu.memory_space<vmem>>, vector<8x32xf32>
    tpu.vector_store %arg9[%c0_41, %c0_42], %89 {strides = array<i32>} : memref<8x32xf32, #tpu.memory_space<vmem>>, vector<8x32xf32>,
    %92 = arith.addi %9, %c1_i32_27 : i32
    %93 = vector.broadcast %92 : i32 to vector<8x1xi32>
    %94 = arith.cmpi eq, %8, %93 : vector<8x1xi32>
    %c0_43 = arith.constant 0 : index
    %c0_44 = arith.constant 0 : index
    %95 = vector.load %arg11[%c0_43, %c0_44] : memref<8x32xf32, #tpu.memory_space<vmem>>, vector<8x32xf32>
    %96 = vector.shape_cast %94 : vector<8x1xi1> to vector<8x1xi1>
    %97 = vector.broadcast %96 : vector<8x1xi1> to vector<8x32xi1>
    %98 = arith.select %97, %89, %95 : vector<8x32xi1>, vector<8x32xf32>
    %c0_45 = arith.constant 0 : index
    %c0_46 = arith.constant 0 : index
    %99 = vector.load %arg11[%c0_45, %c0_46] : memref<8x32xf32, #tpu.memory_space<vmem>>, vector<8x32xf32>
    tpu.vector_store %arg11[%c0_45, %c0_46], %98 {strides = array<i32>} : memref<8x32xf32, #tpu.memory_space<vmem>>, vector<8x32xf32>,
    %c2_i32 = arith.constant 2 : i32
    %100 = arith.index_cast %c2_i32 : i32 to index
    %c0_47 = arith.constant 0 : index
    %c0_48 = arith.constant 0 : index
    %101 = vector.load %arg1[%100, %c0_47, %c0_48] : memref<8x8x128xf32, #tpu.memory_space<vmem>>, vector<1x8x128xf32>
    %102 = vector.shape_cast %101 : vector<1x8x128xf32> to vector<8x128xf32>
    %c0_49 = arith.constant 0 : index
    %c0_50 = arith.constant 0 : index
    %103 = vector.load %arg9[%c0_49, %c0_50] : memref<8x32xf32, #tpu.memory_space<vmem>>, vector<8x32xf32>
    %cst_51 = arith.constant dense<0.000000e+00> : vector<8x128xf32>
    %104 = tpu.matmul %102, %3, %cst_51 {dimension_numbers = #tpu.dot_dimension_numbers<[1], [0], [0], [1], [0, 0, 1, 1], [], []>} : vector<8x128xf32>, vector<128x128xf32>, vector<8x128xf32> -> vector<8x128xf32>
    %cst_52 = arith.constant dense<0.000000e+00> : vector<8x128xf32>
    %105 = tpu.matmul %103, %4, %cst_52 {dimension_numbers = #tpu.dot_dimension_numbers<[1], [0], [0], [1], [0, 0, 1, 1], [], []>} : vector<8x32xf32>, vector<32x128xf32>, vector<8x128xf32> -> vector<8x128xf32>
    %106 = arith.addf %104, %105 : vector<8x128xf32>
    %107 = vector.broadcast %5 : vector<1x128xf32> to vector<8x128xf32>
    %108 = arith.addf %106, %107 : vector<8x128xf32>
    %109 = vector.extract_strided_slice %108 {offsets = [0, 0], sizes = [8, 32], strides = [1, 1]} : vector<8x128xf32> to vector<8x32xf32>
    %110 = arith.negf %109 : vector<8x32xf32>
    %111 = math.exp %110 : vector<8x32xf32>
    %cst_53 = arith.constant 1.000000e+00 : f32
    %112 = vector.broadcast %cst_53 : f32 to vector<8x32xf32>
    %113 = arith.addf %112, %111 : vector<8x32xf32>
    %114 = arith.divf %112, %113 : vector<8x32xf32>
    %115 = vector.extract_strided_slice %108 {offsets = [0, 32], sizes = [8, 32], strides = [1, 1]} : vector<8x128xf32> to vector<8x32xf32>
    %116 = arith.negf %115 : vector<8x32xf32>
    %117 = math.exp %116 : vector<8x32xf32>
    %cst_54 = arith.constant 1.000000e+00 : f32
    %118 = vector.broadcast %cst_54 : f32 to vector<8x32xf32>
    %119 = arith.addf %118, %117 : vector<8x32xf32>
    %120 = arith.divf %118, %119 : vector<8x32xf32>
    %121 = vector.extract_strided_slice %108 {offsets = [0, 64], sizes = [8, 32], strides = [1, 1]} : vector<8x128xf32> to vector<8x32xf32>
    %122 = math.tanh %121 : vector<8x32xf32>
    %123 = vector.extract_strided_slice %108 {offsets = [0, 96], sizes = [8, 32], strides = [1, 1]} : vector<8x128xf32> to vector<8x32xf32>
    %124 = arith.negf %123 : vector<8x32xf32>
    %125 = math.exp %124 : vector<8x32xf32>
    %cst_55 = arith.constant 1.000000e+00 : f32
    %126 = vector.broadcast %cst_55 : f32 to vector<8x32xf32>
    %127 = arith.addf %126, %125 : vector<8x32xf32>
    %128 = arith.divf %126, %127 : vector<8x32xf32>
    %c0_56 = arith.constant 0 : index
    %c0_57 = arith.constant 0 : index
    %129 = vector.load %arg10[%c0_56, %c0_57] : memref<8x32xf32, #tpu.memory_space<vmem>>, vector<8x32xf32>
    %130 = arith.mulf %120, %129 : vector<8x32xf32>
    %131 = arith.mulf %114, %122 : vector<8x32xf32>
    %132 = arith.addf %130, %131 : vector<8x32xf32>
    %133 = math.tanh %132 : vector<8x32xf32>
    %134 = arith.mulf %128, %133 : vector<8x32xf32>
    %c0_58 = arith.constant 0 : index
    %c0_59 = arith.constant 0 : index
    %135 = vector.load %arg10[%c0_58, %c0_59] : memref<8x32xf32, #tpu.memory_space<vmem>>, vector<8x32xf32>
    tpu.vector_store %arg10[%c0_58, %c0_59], %132 {strides = array<i32>} : memref<8x32xf32, #tpu.memory_space<vmem>>, vector<8x32xf32>,
    %c0_60 = arith.constant 0 : index
    %c0_61 = arith.constant 0 : index
    %136 = vector.load %arg9[%c0_60, %c0_61] : memref<8x32xf32, #tpu.memory_space<vmem>>, vector<8x32xf32>
    tpu.vector_store %arg9[%c0_60, %c0_61], %134 {strides = array<i32>} : memref<8x32xf32, #tpu.memory_space<vmem>>, vector<8x32xf32>,
    %137 = arith.addi %9, %c2_i32 : i32
    %138 = vector.broadcast %137 : i32 to vector<8x1xi32>
    %139 = arith.cmpi eq, %8, %138 : vector<8x1xi32>
    %c0_62 = arith.constant 0 : index
    %c0_63 = arith.constant 0 : index
    %140 = vector.load %arg11[%c0_62, %c0_63] : memref<8x32xf32, #tpu.memory_space<vmem>>, vector<8x32xf32>
    %141 = vector.shape_cast %139 : vector<8x1xi1> to vector<8x1xi1>
    %142 = vector.broadcast %141 : vector<8x1xi1> to vector<8x32xi1>
    %143 = arith.select %142, %134, %140 : vector<8x32xi1>, vector<8x32xf32>
    %c0_64 = arith.constant 0 : index
    %c0_65 = arith.constant 0 : index
    %144 = vector.load %arg11[%c0_64, %c0_65] : memref<8x32xf32, #tpu.memory_space<vmem>>, vector<8x32xf32>
    tpu.vector_store %arg11[%c0_64, %c0_65], %143 {strides = array<i32>} : memref<8x32xf32, #tpu.memory_space<vmem>>, vector<8x32xf32>,
    %c3_i32 = arith.constant 3 : i32
    %145 = arith.index_cast %c3_i32 : i32 to index
    %c0_66 = arith.constant 0 : index
    %c0_67 = arith.constant 0 : index
    %146 = vector.load %arg1[%145, %c0_66, %c0_67] : memref<8x8x128xf32, #tpu.memory_space<vmem>>, vector<1x8x128xf32>
    %147 = vector.shape_cast %146 : vector<1x8x128xf32> to vector<8x128xf32>
    %c0_68 = arith.constant 0 : index
    %c0_69 = arith.constant 0 : index
    %148 = vector.load %arg9[%c0_68, %c0_69] : memref<8x32xf32, #tpu.memory_space<vmem>>, vector<8x32xf32>
    %cst_70 = arith.constant dense<0.000000e+00> : vector<8x128xf32>
    %149 = tpu.matmul %147, %3, %cst_70 {dimension_numbers = #tpu.dot_dimension_numbers<[1], [0], [0], [1], [0, 0, 1, 1], [], []>} : vector<8x128xf32>, vector<128x128xf32>, vector<8x128xf32> -> vector<8x128xf32>
    %cst_71 = arith.constant dense<0.000000e+00> : vector<8x128xf32>
    %150 = tpu.matmul %148, %4, %cst_71 {dimension_numbers = #tpu.dot_dimension_numbers<[1], [0], [0], [1], [0, 0, 1, 1], [], []>} : vector<8x32xf32>, vector<32x128xf32>, vector<8x128xf32> -> vector<8x128xf32>
    %151 = arith.addf %149, %150 : vector<8x128xf32>
    %152 = vector.broadcast %5 : vector<1x128xf32> to vector<8x128xf32>
    %153 = arith.addf %151, %152 : vector<8x128xf32>
    %154 = vector.extract_strided_slice %153 {offsets = [0, 0], sizes = [8, 32], strides = [1, 1]} : vector<8x128xf32> to vector<8x32xf32>
    %155 = arith.negf %154 : vector<8x32xf32>
    %156 = math.exp %155 : vector<8x32xf32>
    %cst_72 = arith.constant 1.000000e+00 : f32
    %157 = vector.broadcast %cst_72 : f32 to vector<8x32xf32>
    %158 = arith.addf %157, %156 : vector<8x32xf32>
    %159 = arith.divf %157, %158 : vector<8x32xf32>
    %160 = vector.extract_strided_slice %153 {offsets = [0, 32], sizes = [8, 32], strides = [1, 1]} : vector<8x128xf32> to vector<8x32xf32>
    %161 = arith.negf %160 : vector<8x32xf32>
    %162 = math.exp %161 : vector<8x32xf32>
    %cst_73 = arith.constant 1.000000e+00 : f32
    %163 = vector.broadcast %cst_73 : f32 to vector<8x32xf32>
    %164 = arith.addf %163, %162 : vector<8x32xf32>
    %165 = arith.divf %163, %164 : vector<8x32xf32>
    %166 = vector.extract_strided_slice %153 {offsets = [0, 64], sizes = [8, 32], strides = [1, 1]} : vector<8x128xf32> to vector<8x32xf32>
    %167 = math.tanh %166 : vector<8x32xf32>
    %168 = vector.extract_strided_slice %153 {offsets = [0, 96], sizes = [8, 32], strides = [1, 1]} : vector<8x128xf32> to vector<8x32xf32>
    %169 = arith.negf %168 : vector<8x32xf32>
    %170 = math.exp %169 : vector<8x32xf32>
    %cst_74 = arith.constant 1.000000e+00 : f32
    %171 = vector.broadcast %cst_74 : f32 to vector<8x32xf32>
    %172 = arith.addf %171, %170 : vector<8x32xf32>
    %173 = arith.divf %171, %172 : vector<8x32xf32>
    %c0_75 = arith.constant 0 : index
    %c0_76 = arith.constant 0 : index
    %174 = vector.load %arg10[%c0_75, %c0_76] : memref<8x32xf32, #tpu.memory_space<vmem>>, vector<8x32xf32>
    %175 = arith.mulf %165, %174 : vector<8x32xf32>
    %176 = arith.mulf %159, %167 : vector<8x32xf32>
    %177 = arith.addf %175, %176 : vector<8x32xf32>
    %178 = math.tanh %177 : vector<8x32xf32>
    %179 = arith.mulf %173, %178 : vector<8x32xf32>
    %c0_77 = arith.constant 0 : index
    %c0_78 = arith.constant 0 : index
    %180 = vector.load %arg10[%c0_77, %c0_78] : memref<8x32xf32, #tpu.memory_space<vmem>>, vector<8x32xf32>
    tpu.vector_store %arg10[%c0_77, %c0_78], %177 {strides = array<i32>} : memref<8x32xf32, #tpu.memory_space<vmem>>, vector<8x32xf32>,
    %c0_79 = arith.constant 0 : index
    %c0_80 = arith.constant 0 : index
    %181 = vector.load %arg9[%c0_79, %c0_80] : memref<8x32xf32, #tpu.memory_space<vmem>>, vector<8x32xf32>
    tpu.vector_store %arg9[%c0_79, %c0_80], %179 {strides = array<i32>} : memref<8x32xf32, #tpu.memory_space<vmem>>, vector<8x32xf32>,
    %182 = arith.addi %9, %c3_i32 : i32
    %183 = vector.broadcast %182 : i32 to vector<8x1xi32>
    %184 = arith.cmpi eq, %8, %183 : vector<8x1xi32>
    %c0_81 = arith.constant 0 : index
    %c0_82 = arith.constant 0 : index
    %185 = vector.load %arg11[%c0_81, %c0_82] : memref<8x32xf32, #tpu.memory_space<vmem>>, vector<8x32xf32>
    %186 = vector.shape_cast %184 : vector<8x1xi1> to vector<8x1xi1>
    %187 = vector.broadcast %186 : vector<8x1xi1> to vector<8x32xi1>
    %188 = arith.select %187, %179, %185 : vector<8x32xi1>, vector<8x32xf32>
    %c0_83 = arith.constant 0 : index
    %c0_84 = arith.constant 0 : index
    %189 = vector.load %arg11[%c0_83, %c0_84] : memref<8x32xf32, #tpu.memory_space<vmem>>, vector<8x32xf32>
    tpu.vector_store %arg11[%c0_83, %c0_84], %188 {strides = array<i32>} : memref<8x32xf32, #tpu.memory_space<vmem>>, vector<8x32xf32>,
    %c4_i32 = arith.constant 4 : i32
    %190 = arith.index_cast %c4_i32 : i32 to index
    %c0_85 = arith.constant 0 : index
    %c0_86 = arith.constant 0 : index
    %191 = vector.load %arg1[%190, %c0_85, %c0_86] : memref<8x8x128xf32, #tpu.memory_space<vmem>>, vector<1x8x128xf32>
    %192 = vector.shape_cast %191 : vector<1x8x128xf32> to vector<8x128xf32>
    %c0_87 = arith.constant 0 : index
    %c0_88 = arith.constant 0 : index
    %193 = vector.load %arg9[%c0_87, %c0_88] : memref<8x32xf32, #tpu.memory_space<vmem>>, vector<8x32xf32>
    %cst_89 = arith.constant dense<0.000000e+00> : vector<8x128xf32>
    %194 = tpu.matmul %192, %3, %cst_89 {dimension_numbers = #tpu.dot_dimension_numbers<[1], [0], [0], [1], [0, 0, 1, 1], [], []>} : vector<8x128xf32>, vector<128x128xf32>, vector<8x128xf32> -> vector<8x128xf32>
    %cst_90 = arith.constant dense<0.000000e+00> : vector<8x128xf32>
    %195 = tpu.matmul %193, %4, %cst_90 {dimension_numbers = #tpu.dot_dimension_numbers<[1], [0], [0], [1], [0, 0, 1, 1], [], []>} : vector<8x32xf32>, vector<32x128xf32>, vector<8x128xf32> -> vector<8x128xf32>
    %196 = arith.addf %194, %195 : vector<8x128xf32>
    %197 = vector.broadcast %5 : vector<1x128xf32> to vector<8x128xf32>
    %198 = arith.addf %196, %197 : vector<8x128xf32>
    %199 = vector.extract_strided_slice %198 {offsets = [0, 0], sizes = [8, 32], strides = [1, 1]} : vector<8x128xf32> to vector<8x32xf32>
    %200 = arith.negf %199 : vector<8x32xf32>
    %201 = math.exp %200 : vector<8x32xf32>
    %cst_91 = arith.constant 1.000000e+00 : f32
    %202 = vector.broadcast %cst_91 : f32 to vector<8x32xf32>
    %203 = arith.addf %202, %201 : vector<8x32xf32>
    %204 = arith.divf %202, %203 : vector<8x32xf32>
    %205 = vector.extract_strided_slice %198 {offsets = [0, 32], sizes = [8, 32], strides = [1, 1]} : vector<8x128xf32> to vector<8x32xf32>
    %206 = arith.negf %205 : vector<8x32xf32>
    %207 = math.exp %206 : vector<8x32xf32>
    %cst_92 = arith.constant 1.000000e+00 : f32
    %208 = vector.broadcast %cst_92 : f32 to vector<8x32xf32>
    %209 = arith.addf %208, %207 : vector<8x32xf32>
    %210 = arith.divf %208, %209 : vector<8x32xf32>
    %211 = vector.extract_strided_slice %198 {offsets = [0, 64], sizes = [8, 32], strides = [1, 1]} : vector<8x128xf32> to vector<8x32xf32>
    %212 = math.tanh %211 : vector<8x32xf32>
    %213 = vector.extract_strided_slice %198 {offsets = [0, 96], sizes = [8, 32], strides = [1, 1]} : vector<8x128xf32> to vector<8x32xf32>
    %214 = arith.negf %213 : vector<8x32xf32>
    %215 = math.exp %214 : vector<8x32xf32>
    %cst_93 = arith.constant 1.000000e+00 : f32
    %216 = vector.broadcast %cst_93 : f32 to vector<8x32xf32>
    %217 = arith.addf %216, %215 : vector<8x32xf32>
    %218 = arith.divf %216, %217 : vector<8x32xf32>
    %c0_94 = arith.constant 0 : index
    %c0_95 = arith.constant 0 : index
    %219 = vector.load %arg10[%c0_94, %c0_95] : memref<8x32xf32, #tpu.memory_space<vmem>>, vector<8x32xf32>
    %220 = arith.mulf %210, %219 : vector<8x32xf32>
    %221 = arith.mulf %204, %212 : vector<8x32xf32>
    %222 = arith.addf %220, %221 : vector<8x32xf32>
    %223 = math.tanh %222 : vector<8x32xf32>
    %224 = arith.mulf %218, %223 : vector<8x32xf32>
    %c0_96 = arith.constant 0 : index
    %c0_97 = arith.constant 0 : index
    %225 = vector.load %arg10[%c0_96, %c0_97] : memref<8x32xf32, #tpu.memory_space<vmem>>, vector<8x32xf32>
    tpu.vector_store %arg10[%c0_96, %c0_97], %222 {strides = array<i32>} : memref<8x32xf32, #tpu.memory_space<vmem>>, vector<8x32xf32>,
    %c0_98 = arith.constant 0 : index
    %c0_99 = arith.constant 0 : index
    %226 = vector.load %arg9[%c0_98, %c0_99] : memref<8x32xf32, #tpu.memory_space<vmem>>, vector<8x32xf32>
    tpu.vector_store %arg9[%c0_98, %c0_99], %224 {strides = array<i32>} : memref<8x32xf32, #tpu.memory_space<vmem>>, vector<8x32xf32>,
    %227 = arith.addi %9, %c4_i32 : i32
    %228 = vector.broadcast %227 : i32 to vector<8x1xi32>
    %229 = arith.cmpi eq, %8, %228 : vector<8x1xi32>
    %c0_100 = arith.constant 0 : index
    %c0_101 = arith.constant 0 : index
    %230 = vector.load %arg11[%c0_100, %c0_101] : memref<8x32xf32, #tpu.memory_space<vmem>>, vector<8x32xf32>
    %231 = vector.shape_cast %229 : vector<8x1xi1> to vector<8x1xi1>
    %232 = vector.broadcast %231 : vector<8x1xi1> to vector<8x32xi1>
    %233 = arith.select %232, %224, %230 : vector<8x32xi1>, vector<8x32xf32>
    %c0_102 = arith.constant 0 : index
    %c0_103 = arith.constant 0 : index
    %234 = vector.load %arg11[%c0_102, %c0_103] : memref<8x32xf32, #tpu.memory_space<vmem>>, vector<8x32xf32>
    tpu.vector_store %arg11[%c0_102, %c0_103], %233 {strides = array<i32>} : memref<8x32xf32, #tpu.memory_space<vmem>>, vector<8x32xf32>,
    %c5_i32 = arith.constant 5 : i32
    %235 = arith.index_cast %c5_i32 : i32 to index
    %c0_104 = arith.constant 0 : index
    %c0_105 = arith.constant 0 : index
    %236 = vector.load %arg1[%235, %c0_104, %c0_105] : memref<8x8x128xf32, #tpu.memory_space<vmem>>, vector<1x8x128xf32>
    %237 = vector.shape_cast %236 : vector<1x8x128xf32> to vector<8x128xf32>
    %c0_106 = arith.constant 0 : index
    %c0_107 = arith.constant 0 : index
    %238 = vector.load %arg9[%c0_106, %c0_107] : memref<8x32xf32, #tpu.memory_space<vmem>>, vector<8x32xf32>
    %cst_108 = arith.constant dense<0.000000e+00> : vector<8x128xf32>
    %239 = tpu.matmul %237, %3, %cst_108 {dimension_numbers = #tpu.dot_dimension_numbers<[1], [0], [0], [1], [0, 0, 1, 1], [], []>} : vector<8x128xf32>, vector<128x128xf32>, vector<8x128xf32> -> vector<8x128xf32>
    %cst_109 = arith.constant dense<0.000000e+00> : vector<8x128xf32>
    %240 = tpu.matmul %238, %4, %cst_109 {dimension_numbers = #tpu.dot_dimension_numbers<[1], [0], [0], [1], [0, 0, 1, 1], [], []>} : vector<8x32xf32>, vector<32x128xf32>, vector<8x128xf32> -> vector<8x128xf32>
    %241 = arith.addf %239, %240 : vector<8x128xf32>
    %242 = vector.broadcast %5 : vector<1x128xf32> to vector<8x128xf32>
    %243 = arith.addf %241, %242 : vector<8x128xf32>
    %244 = vector.extract_strided_slice %243 {offsets = [0, 0], sizes = [8, 32], strides = [1, 1]} : vector<8x128xf32> to vector<8x32xf32>
    %245 = arith.negf %244 : vector<8x32xf32>
    %246 = math.exp %245 : vector<8x32xf32>
    %cst_110 = arith.constant 1.000000e+00 : f32
    %247 = vector.broadcast %cst_110 : f32 to vector<8x32xf32>
    %248 = arith.addf %247, %246 : vector<8x32xf32>
    %249 = arith.divf %247, %248 : vector<8x32xf32>
    %250 = vector.extract_strided_slice %243 {offsets = [0, 32], sizes = [8, 32], strides = [1, 1]} : vector<8x128xf32> to vector<8x32xf32>
    %251 = arith.negf %250 : vector<8x32xf32>
    %252 = math.exp %251 : vector<8x32xf32>
    %cst_111 = arith.constant 1.000000e+00 : f32
    %253 = vector.broadcast %cst_111 : f32 to vector<8x32xf32>
    %254 = arith.addf %253, %252 : vector<8x32xf32>
    %255 = arith.divf %253, %254 : vector<8x32xf32>
    %256 = vector.extract_strided_slice %243 {offsets = [0, 64], sizes = [8, 32], strides = [1, 1]} : vector<8x128xf32> to vector<8x32xf32>
    %257 = math.tanh %256 : vector<8x32xf32>
    %258 = vector.extract_strided_slice %243 {offsets = [0, 96], sizes = [8, 32], strides = [1, 1]} : vector<8x128xf32> to vector<8x32xf32>
    %259 = arith.negf %258 : vector<8x32xf32>
    %260 = math.exp %259 : vector<8x32xf32>
    %cst_112 = arith.constant 1.000000e+00 : f32
    %261 = vector.broadcast %cst_112 : f32 to vector<8x32xf32>
    %262 = arith.addf %261, %260 : vector<8x32xf32>
    %263 = arith.divf %261, %262 : vector<8x32xf32>
    %c0_113 = arith.constant 0 : index
    %c0_114 = arith.constant 0 : index
    %264 = vector.load %arg10[%c0_113, %c0_114] : memref<8x32xf32, #tpu.memory_space<vmem>>, vector<8x32xf32>
    %265 = arith.mulf %255, %264 : vector<8x32xf32>
    %266 = arith.mulf %249, %257 : vector<8x32xf32>
    %267 = arith.addf %265, %266 : vector<8x32xf32>
    %268 = math.tanh %267 : vector<8x32xf32>
    %269 = arith.mulf %263, %268 : vector<8x32xf32>
    %c0_115 = arith.constant 0 : index
    %c0_116 = arith.constant 0 : index
    %270 = vector.load %arg10[%c0_115, %c0_116] : memref<8x32xf32, #tpu.memory_space<vmem>>, vector<8x32xf32>
    tpu.vector_store %arg10[%c0_115, %c0_116], %267 {strides = array<i32>} : memref<8x32xf32, #tpu.memory_space<vmem>>, vector<8x32xf32>,
    %c0_117 = arith.constant 0 : index
    %c0_118 = arith.constant 0 : index
    %271 = vector.load %arg9[%c0_117, %c0_118] : memref<8x32xf32, #tpu.memory_space<vmem>>, vector<8x32xf32>
    tpu.vector_store %arg9[%c0_117, %c0_118], %269 {strides = array<i32>} : memref<8x32xf32, #tpu.memory_space<vmem>>, vector<8x32xf32>,
    %272 = arith.addi %9, %c5_i32 : i32
    %273 = vector.broadcast %272 : i32 to vector<8x1xi32>
    %274 = arith.cmpi eq, %8, %273 : vector<8x1xi32>
    %c0_119 = arith.constant 0 : index
    %c0_120 = arith.constant 0 : index
    %275 = vector.load %arg11[%c0_119, %c0_120] : memref<8x32xf32, #tpu.memory_space<vmem>>, vector<8x32xf32>
    %276 = vector.shape_cast %274 : vector<8x1xi1> to vector<8x1xi1>
    %277 = vector.broadcast %276 : vector<8x1xi1> to vector<8x32xi1>
    %278 = arith.select %277, %269, %275 : vector<8x32xi1>, vector<8x32xf32>
    %c0_121 = arith.constant 0 : index
    %c0_122 = arith.constant 0 : index
    %279 = vector.load %arg11[%c0_121, %c0_122] : memref<8x32xf32, #tpu.memory_space<vmem>>, vector<8x32xf32>
    tpu.vector_store %arg11[%c0_121, %c0_122], %278 {strides = array<i32>} : memref<8x32xf32, #tpu.memory_space<vmem>>, vector<8x32xf32>,
    %c6_i32 = arith.constant 6 : i32
    %280 = arith.index_cast %c6_i32 : i32 to index
    %c0_123 = arith.constant 0 : index
    %c0_124 = arith.constant 0 : index
    %281 = vector.load %arg1[%280, %c0_123, %c0_124] : memref<8x8x128xf32, #tpu.memory_space<vmem>>, vector<1x8x128xf32>
    %282 = vector.shape_cast %281 : vector<1x8x128xf32> to vector<8x128xf32>
    %c0_125 = arith.constant 0 : index
    %c0_126 = arith.constant 0 : index
    %283 = vector.load %arg9[%c0_125, %c0_126] : memref<8x32xf32, #tpu.memory_space<vmem>>, vector<8x32xf32>
    %cst_127 = arith.constant dense<0.000000e+00> : vector<8x128xf32>
    %284 = tpu.matmul %282, %3, %cst_127 {dimension_numbers = #tpu.dot_dimension_numbers<[1], [0], [0], [1], [0, 0, 1, 1], [], []>} : vector<8x128xf32>, vector<128x128xf32>, vector<8x128xf32> -> vector<8x128xf32>
    %cst_128 = arith.constant dense<0.000000e+00> : vector<8x128xf32>
    %285 = tpu.matmul %283, %4, %cst_128 {dimension_numbers = #tpu.dot_dimension_numbers<[1], [0], [0], [1], [0, 0, 1, 1], [], []>} : vector<8x32xf32>, vector<32x128xf32>, vector<8x128xf32> -> vector<8x128xf32>
    %286 = arith.addf %284, %285 : vector<8x128xf32>
    %287 = vector.broadcast %5 : vector<1x128xf32> to vector<8x128xf32>
    %288 = arith.addf %286, %287 : vector<8x128xf32>
    %289 = vector.extract_strided_slice %288 {offsets = [0, 0], sizes = [8, 32], strides = [1, 1]} : vector<8x128xf32> to vector<8x32xf32>
    %290 = arith.negf %289 : vector<8x32xf32>
    %291 = math.exp %290 : vector<8x32xf32>
    %cst_129 = arith.constant 1.000000e+00 : f32
    %292 = vector.broadcast %cst_129 : f32 to vector<8x32xf32>
    %293 = arith.addf %292, %291 : vector<8x32xf32>
    %294 = arith.divf %292, %293 : vector<8x32xf32>
    %295 = vector.extract_strided_slice %288 {offsets = [0, 32], sizes = [8, 32], strides = [1, 1]} : vector<8x128xf32> to vector<8x32xf32>
    %296 = arith.negf %295 : vector<8x32xf32>
    %297 = math.exp %296 : vector<8x32xf32>
    %cst_130 = arith.constant 1.000000e+00 : f32
    %298 = vector.broadcast %cst_130 : f32 to vector<8x32xf32>
    %299 = arith.addf %298, %297 : vector<8x32xf32>
    %300 = arith.divf %298, %299 : vector<8x32xf32>
    %301 = vector.extract_strided_slice %288 {offsets = [0, 64], sizes = [8, 32], strides = [1, 1]} : vector<8x128xf32> to vector<8x32xf32>
    %302 = math.tanh %301 : vector<8x32xf32>
    %303 = vector.extract_strided_slice %288 {offsets = [0, 96], sizes = [8, 32], strides = [1, 1]} : vector<8x128xf32> to vector<8x32xf32>
    %304 = arith.negf %303 : vector<8x32xf32>
    %305 = math.exp %304 : vector<8x32xf32>
    %cst_131 = arith.constant 1.000000e+00 : f32
    %306 = vector.broadcast %cst_131 : f32 to vector<8x32xf32>
    %307 = arith.addf %306, %305 : vector<8x32xf32>
    %308 = arith.divf %306, %307 : vector<8x32xf32>
    %c0_132 = arith.constant 0 : index
    %c0_133 = arith.constant 0 : index
    %309 = vector.load %arg10[%c0_132, %c0_133] : memref<8x32xf32, #tpu.memory_space<vmem>>, vector<8x32xf32>
    %310 = arith.mulf %300, %309 : vector<8x32xf32>
    %311 = arith.mulf %294, %302 : vector<8x32xf32>
    %312 = arith.addf %310, %311 : vector<8x32xf32>
    %313 = math.tanh %312 : vector<8x32xf32>
    %314 = arith.mulf %308, %313 : vector<8x32xf32>
    %c0_134 = arith.constant 0 : index
    %c0_135 = arith.constant 0 : index
    %315 = vector.load %arg10[%c0_134, %c0_135] : memref<8x32xf32, #tpu.memory_space<vmem>>, vector<8x32xf32>
    tpu.vector_store %arg10[%c0_134, %c0_135], %312 {strides = array<i32>} : memref<8x32xf32, #tpu.memory_space<vmem>>, vector<8x32xf32>,
    %c0_136 = arith.constant 0 : index
    %c0_137 = arith.constant 0 : index
    %316 = vector.load %arg9[%c0_136, %c0_137] : memref<8x32xf32, #tpu.memory_space<vmem>>, vector<8x32xf32>
    tpu.vector_store %arg9[%c0_136, %c0_137], %314 {strides = array<i32>} : memref<8x32xf32, #tpu.memory_space<vmem>>, vector<8x32xf32>,
    %317 = arith.addi %9, %c6_i32 : i32
    %318 = vector.broadcast %317 : i32 to vector<8x1xi32>
    %319 = arith.cmpi eq, %8, %318 : vector<8x1xi32>
    %c0_138 = arith.constant 0 : index
    %c0_139 = arith.constant 0 : index
    %320 = vector.load %arg11[%c0_138, %c0_139] : memref<8x32xf32, #tpu.memory_space<vmem>>, vector<8x32xf32>
    %321 = vector.shape_cast %319 : vector<8x1xi1> to vector<8x1xi1>
    %322 = vector.broadcast %321 : vector<8x1xi1> to vector<8x32xi1>
    %323 = arith.select %322, %314, %320 : vector<8x32xi1>, vector<8x32xf32>
    %c0_140 = arith.constant 0 : index
    %c0_141 = arith.constant 0 : index
    %324 = vector.load %arg11[%c0_140, %c0_141] : memref<8x32xf32, #tpu.memory_space<vmem>>, vector<8x32xf32>
    tpu.vector_store %arg11[%c0_140, %c0_141], %323 {strides = array<i32>} : memref<8x32xf32, #tpu.memory_space<vmem>>, vector<8x32xf32>,
    %c7_i32 = arith.constant 7 : i32
    %325 = arith.index_cast %c7_i32 : i32 to index
    %c0_142 = arith.constant 0 : index
    %c0_143 = arith.constant 0 : index
    %326 = vector.load %arg1[%325, %c0_142, %c0_143] : memref<8x8x128xf32, #tpu.memory_space<vmem>>, vector<1x8x128xf32>
    %327 = vector.shape_cast %326 : vector<1x8x128xf32> to vector<8x128xf32>
    %c0_144 = arith.constant 0 : index
    %c0_145 = arith.constant 0 : index
    %328 = vector.load %arg9[%c0_144, %c0_145] : memref<8x32xf32, #tpu.memory_space<vmem>>, vector<8x32xf32>
    %cst_146 = arith.constant dense<0.000000e+00> : vector<8x128xf32>
    %329 = tpu.matmul %327, %3, %cst_146 {dimension_numbers = #tpu.dot_dimension_numbers<[1], [0], [0], [1], [0, 0, 1, 1], [], []>} : vector<8x128xf32>, vector<128x128xf32>, vector<8x128xf32> -> vector<8x128xf32>
    %cst_147 = arith.constant dense<0.000000e+00> : vector<8x128xf32>
    %330 = tpu.matmul %328, %4, %cst_147 {dimension_numbers = #tpu.dot_dimension_numbers<[1], [0], [0], [1], [0, 0, 1, 1], [], []>} : vector<8x32xf32>, vector<32x128xf32>, vector<8x128xf32> -> vector<8x128xf32>
    %331 = arith.addf %329, %330 : vector<8x128xf32>
    %332 = vector.broadcast %5 : vector<1x128xf32> to vector<8x128xf32>
    %333 = arith.addf %331, %332 : vector<8x128xf32>
    %334 = vector.extract_strided_slice %333 {offsets = [0, 0], sizes = [8, 32], strides = [1, 1]} : vector<8x128xf32> to vector<8x32xf32>
    %335 = arith.negf %334 : vector<8x32xf32>
    %336 = math.exp %335 : vector<8x32xf32>
    %cst_148 = arith.constant 1.000000e+00 : f32
    %337 = vector.broadcast %cst_148 : f32 to vector<8x32xf32>
    %338 = arith.addf %337, %336 : vector<8x32xf32>
    %339 = arith.divf %337, %338 : vector<8x32xf32>
    %340 = vector.extract_strided_slice %333 {offsets = [0, 32], sizes = [8, 32], strides = [1, 1]} : vector<8x128xf32> to vector<8x32xf32>
    %341 = arith.negf %340 : vector<8x32xf32>
    %342 = math.exp %341 : vector<8x32xf32>
    %cst_149 = arith.constant 1.000000e+00 : f32
    %343 = vector.broadcast %cst_149 : f32 to vector<8x32xf32>
    %344 = arith.addf %343, %342 : vector<8x32xf32>
    %345 = arith.divf %343, %344 : vector<8x32xf32>
    %346 = vector.extract_strided_slice %333 {offsets = [0, 64], sizes = [8, 32], strides = [1, 1]} : vector<8x128xf32> to vector<8x32xf32>
    %347 = math.tanh %346 : vector<8x32xf32>
    %348 = vector.extract_strided_slice %333 {offsets = [0, 96], sizes = [8, 32], strides = [1, 1]} : vector<8x128xf32> to vector<8x32xf32>
    %349 = arith.negf %348 : vector<8x32xf32>
    %350 = math.exp %349 : vector<8x32xf32>
    %cst_150 = arith.constant 1.000000e+00 : f32
    %351 = vector.broadcast %cst_150 : f32 to vector<8x32xf32>
    %352 = arith.addf %351, %350 : vector<8x32xf32>
    %353 = arith.divf %351, %352 : vector<8x32xf32>
    %c0_151 = arith.constant 0 : index
    %c0_152 = arith.constant 0 : index
    %354 = vector.load %arg10[%c0_151, %c0_152] : memref<8x32xf32, #tpu.memory_space<vmem>>, vector<8x32xf32>
    %355 = arith.mulf %345, %354 : vector<8x32xf32>
    %356 = arith.mulf %339, %347 : vector<8x32xf32>
    %357 = arith.addf %355, %356 : vector<8x32xf32>
    %358 = math.tanh %357 : vector<8x32xf32>
    %359 = arith.mulf %353, %358 : vector<8x32xf32>
    %c0_153 = arith.constant 0 : index
    %c0_154 = arith.constant 0 : index
    %360 = vector.load %arg10[%c0_153, %c0_154] : memref<8x32xf32, #tpu.memory_space<vmem>>, vector<8x32xf32>
    tpu.vector_store %arg10[%c0_153, %c0_154], %357 {strides = array<i32>} : memref<8x32xf32, #tpu.memory_space<vmem>>, vector<8x32xf32>,
    %c0_155 = arith.constant 0 : index
    %c0_156 = arith.constant 0 : index
    %361 = vector.load %arg9[%c0_155, %c0_156] : memref<8x32xf32, #tpu.memory_space<vmem>>, vector<8x32xf32>
    tpu.vector_store %arg9[%c0_155, %c0_156], %359 {strides = array<i32>} : memref<8x32xf32, #tpu.memory_space<vmem>>, vector<8x32xf32>,
    %362 = arith.addi %9, %c7_i32 : i32
    %363 = vector.broadcast %362 : i32 to vector<8x1xi32>
    %364 = arith.cmpi eq, %8, %363 : vector<8x1xi32>
    %c0_157 = arith.constant 0 : index
    %c0_158 = arith.constant 0 : index
    %365 = vector.load %arg11[%c0_157, %c0_158] : memref<8x32xf32, #tpu.memory_space<vmem>>, vector<8x32xf32>
    %366 = vector.shape_cast %364 : vector<8x1xi1> to vector<8x1xi1>
    %367 = vector.broadcast %366 : vector<8x1xi1> to vector<8x32xi1>
    %368 = arith.select %367, %359, %365 : vector<8x32xi1>, vector<8x32xf32>
    %c0_159 = arith.constant 0 : index
    %c0_160 = arith.constant 0 : index
    %369 = vector.load %arg11[%c0_159, %c0_160] : memref<8x32xf32, #tpu.memory_space<vmem>>, vector<8x32xf32>
    tpu.vector_store %arg11[%c0_159, %c0_160], %368 {strides = array<i32>} : memref<8x32xf32, #tpu.memory_space<vmem>>, vector<8x32xf32>,
    %c8_i32_161 = arith.constant 8 : i32
    %c0_i32_162 = arith.constant 0 : i32
    %370 = arith.cmpi eq, %arg0, %c0_i32_162 : i32
    %371 = arith.extui %370 : i1 to i32
    %c0_i32_163 = arith.constant 0 : i32
    %372 = arith.cmpi ne, %371, %c0_i32_163 : i32
    scf.if %372 {
      %c0_164 = arith.constant 0 : index
      %c0_165 = arith.constant 0 : index
      %373 = vector.load %arg5[%c0_164, %c0_165] : memref<8x8xf32, #tpu.memory_space<vmem>>, vector<8x8xf32>
      %c0_166 = arith.constant 0 : index
      %c0_167 = arith.constant 0 : index
      %374 = vector.load %arg6[%c0_166, %c0_167] : memref<8x8xf32, #tpu.memory_space<vmem>>, vector<8x8xf32>
      %c0_168 = arith.constant 0 : index
      %c0_169 = arith.constant 0 : index
      %375 = vector.load %arg11[%c0_168, %c0_169] : memref<8x32xf32, #tpu.memory_space<vmem>>, vector<8x8xf32>
      %376 = arith.mulf %373, %375 : vector<8x8xf32>
      %377 = arith.mulf %374, %373 : vector<8x8xf32>
      %378 = arith.addf %376, %377 : vector<8x8xf32>
      %cst_170 = arith.constant dense<0.000000e+00> : vector<8xf32>
      %379 = vector.multi_reduction <add>, %378, %cst_170 [0] : vector<8x8xf32> to vector<8xf32>
      %380 = vector.shape_cast %379 : vector<8xf32> to vector<1x8xf32>
      %c0_171 = arith.constant 0 : index
      %c0_172 = arith.constant 0 : index
      %381 = vector.load %arg8[%c0_171, %c0_172] : memref<1x8xf32, #tpu.memory_space<vmem>>, vector<1x8xf32>
      tpu.vector_store %arg8[%c0_171, %c0_172], %380 {strides = array<i32>} : memref<1x8xf32, #tpu.memory_space<vmem>>, vector<1x8xf32>,
    } else {
    }
    return
  }
  func.func @transform_0(%arg0: i32) -> (i32, i32, i32) {
    %c0_i32 = arith.constant 0 : i32
    %c0_i32_0 = arith.constant 0 : i32
    %c0_i32_1 = arith.constant 0 : i32
    return %arg0, %c0_i32, %c0_i32_0 : i32, i32, i32
  }
  func.func @transform_1(%arg0: i32) -> (i32, i32) {
    %c0_i32 = arith.constant 0 : i32
    %c0_i32_0 = arith.constant 0 : i32
    %c0_i32_1 = arith.constant 0 : i32
    return %c0_i32, %c0_i32_0 : i32, i32
  }
  func.func @transform_2(%arg0: i32) -> (i32, i32) {
    %c0_i32 = arith.constant 0 : i32
    %c0_i32_0 = arith.constant 0 : i32
    %c0_i32_1 = arith.constant 0 : i32
    return %c0_i32, %c0_i32_0 : i32, i32
  }
  func.func @transform_3(%arg0: i32) -> (i32, i32) {
    %c0_i32 = arith.constant 0 : i32
    %c0_i32_0 = arith.constant 0 : i32
    %c0_i32_1 = arith.constant 0 : i32
    return %c0_i32, %c0_i32_0 : i32, i32
  }
  func.func @transform_4(%arg0: i32) -> (i32, i32) {
    %c0_i32 = arith.constant 0 : i32
    %c0_i32_0 = arith.constant 0 : i32
    %c0_i32_1 = arith.constant 0 : i32
    return %c0_i32, %c0_i32_0 : i32, i32
  }
  func.func @transform_5(%arg0: i32) -> (i32, i32) {
    %c0_i32 = arith.constant 0 : i32
    %c0_i32_0 = arith.constant 0 : i32
    %c0_i32_1 = arith.constant 0 : i32
    return %c0_i32, %c0_i32_0 : i32, i32
  }
  func.func @transform_6(%arg0: i32) -> (i32, i32) {
    %c0_i32 = arith.constant 0 : i32
    %c0_i32_0 = arith.constant 0 : i32
    %c0_i32_1 = arith.constant 0 : i32
    return %c0_i32, %c0_i32_0 : i32, i32
  }
  func.func @transform_7(%arg0: i32) -> (i32, i32) {
    %c0_i32 = arith.constant 0 : i32
    %c0_i32_0 = arith.constant 0 : i32
    %c0_i32_1 = arith.constant 0 : i32
    return %c0_i32, %c0_i32_0 : i32, i32
  }
}

</mosaic_0001>

<llo_original>
// kernel: tpu_custom_call.1
$region0: #{tpu_custom_call.1}
  #allocation0 [shape = 'u32[]', space=smem, size = 0x4, offset = 0x4, fixed_abs, tag = 'smem constant byte address 0x4 - core index']
  #allocation1 [shape = 'u32[144,128]{1,0:T(1,128)}', space=vmem, size = 0x12000, scoped, tag = 'internal scratch']
  #allocation2 [shape = 'f32[8,32]{1,0:T(8,128)}', space=vmem, size = 0x1000, scoped, tag = 'scratch operand']
  #allocation3 [shape = 'f32[8,32]{1,0:T(8,128)}', space=vmem, size = 0x1000, scoped, tag = 'scratch operand']
  #allocation4 [shape = 'f32[8,32]{1,0:T(8,128)}', space=vmem, size = 0x1000, scoped, tag = 'scratch operand']
  %s0 = inlined_call_operand.hbm [shape: f32[8,8,128], index: 0, kind: input, shape index: {}]
  %s1 = inlined_call_operand.hbm [shape: f32[128,128], index: 1, kind: input, shape index: {}]
  %s2 = inlined_call_operand.hbm [shape: f32[32,128], index: 2, kind: input, shape index: {}]
  %s3 = inlined_call_operand.hbm [shape: f32[1,128], index: 3, kind: input, shape index: {}]
  %s4 = inlined_call_operand.hbm [shape: f32[8,8], index: 4, kind: input, shape index: {}]
  %s5 = inlined_call_operand.hbm [shape: f32[8,8], index: 5, kind: input, shape index: {}]
  %s6 = inlined_call_operand.hbm [shape: s32[8,1], index: 6, kind: input, shape index: {}]
  %s7 = inlined_call_operand.hbm [shape: f32[1,8], index: 7, kind: output, shape index: {}]
  %s8 = sld [smem:[#allocation0]]
  $region74: #{tpu_custom_call.1} parent=0
    _
  %s10 = ssub.s32 1, %s8
  %s11 = scalar_select 0, %s10, %s8
  $region1: #{tpu_custom_call.1} parent=0
    #allocation5 [shape = 'u8[32768]{0}', space=vmem, size = 0x8000, scoped, tag = 'input window, operand 0, single buffered']
    #allocation6 [shape = 's32[1]{0}', space=sflag, size = 0x4, scoped, tag = 'scoped memory for tpu_custom_call.1']
    #allocation7 [shape = 's32[1]{0}', space=sflag, size = 0x4, scoped, tag = 'scoped memory for tpu_custom_call.1']
    #allocation8 [shape = 'u8[65536]{0}', space=vmem, size = 0x10000, scoped, tag = 'input window, operand 1, single buffered']
    #allocation9 [shape = 's32[1]{0}', space=sflag, size = 0x4, scoped, tag = 'scoped memory for tpu_custom_call.1']
    #allocation10 [shape = 'u8[16384]{0}', space=vmem, size = 0x4000, scoped, tag = 'input window, operand 2, single buffered']
    #allocation11 [shape = 'u8[512]{0}', space=vmem, size = 0x400, scoped, tag = 'input window, operand 3, single buffered']
    #allocation12 [shape = 's32[1]{0}', space=sflag, size = 0x4, scoped, tag = 'scoped memory for tpu_custom_call.1']
    #allocation13 [shape = 'u8[4096]{0}', space=vmem, size = 0x1000, scoped, tag = 'input window, operand 4, single buffered']
    #allocation14 [shape = 'u8[4096]{0}', space=vmem, size = 0x1000, scoped, tag = 'input window, operand 5, single buffered']
    #allocation15 [shape = 's32[1]{0}', space=sflag, size = 0x4, scoped, tag = 'scoped memory for tpu_custom_call.1']
    #allocation16 [shape = 'u8[4096]{0}', space=vmem, size = 0x1000, scoped, tag = 'input window, operand 6, single buffered']
    #allocation17 [shape = 'u8[512]{0}', space=vmem, size = 0x400, scoped, tag = 'output window, operand 0, single buffered']
    %12 = vsyncpa [#allocation6], 0
    %13 = vsyncpa [#allocation9], 0
    %14 = vsyncpa [#allocation12], 0
    %15 = vsyncpa [#allocation15], 0
    %16 = vsyncpa [#allocation7], 0
    // Predicated region
    $region2: #{tpu_custom_call.1} parent=1 // pred_check
      _
    $region3: #{tpu_custom_call.1} parent=1 // pred_check_branch
      %18 = sbr.rel (0) target = $region5
    $region4: #{tpu_custom_call.1} parent=1 // pred_region
      %s20 = ssub.s32 1024, 1024
      %21 = vsyncadd [#allocation6], %s20
      %s22 = sshll.u32 [#allocation5], 4
      %s23 = int_to_ptr.vmem [resolvable:$true] %s22
      %28 = dma.hbm_to_vmem [thread:$0]  %s0, 1024, %s23, [#allocation6], 128, 128, 8
    $region5: #{tpu_custom_call.1} parent=1 // pred_fallthru
      _
    // Predicated region
    $region6: #{tpu_custom_call.1} parent=1 // pred_check
      _
    $region7: #{tpu_custom_call.1} parent=1 // pred_check_branch
      %30 = sbr.rel (0) target = $region9
    $region8: #{tpu_custom_call.1} parent=1 // pred_region
      %s32 = ssub.s32 2048, 2048
      %33 = vsyncadd [#allocation9], %s32
      %s34 = sshll.u32 [#allocation8], 4
      %s35 = int_to_ptr.vmem [resolvable:$true] %s34
      %40 = dma.hbm_to_vmem [thread:$0]  %s1, 2048, %s35, [#allocation9], 128, 128, 8
    $region9: #{tpu_custom_call.1} parent=1 // pred_fallthru
      _
    // Predicated region
    $region10: #{tpu_custom_call.1} parent=1 // pred_check
      _
    $region11: #{tpu_custom_call.1} parent=1 // pred_check_branch
      %42 = sbr.rel (0) target = $region13
    $region12: #{tpu_custom_call.1} parent=1 // pred_region
      %s44 = ssub.s32 512, 512
      %45 = vsyncadd [#allocation9], %s44
      %s46 = sshll.u32 [#allocation10], 4
      %s47 = int_to_ptr.vmem [resolvable:$true] %s46
      %52 = dma.hbm_to_vmem [thread:$0]  %s2, 512, %s47, [#allocation9], 128, 128, 8
    $region13: #{tpu_custom_call.1} parent=1 // pred_fallthru
      _
    // Predicated region
    $region14: #{tpu_custom_call.1} parent=1 // pred_check
      _
    $region15: #{tpu_custom_call.1} parent=1 // pred_check_branch
      %54 = sbr.rel (0) target = $region17
    $region16: #{tpu_custom_call.1} parent=1 // pred_region
      %s56 = ssub.s32 16, 16
      %57 = vsyncadd [#allocation12], %s56
      %s59 = sshll.u32 [#allocation11], 4
      %s60 = int_to_ptr.vmem [resolvable:$true] %s59
      %62 = dma.hbm_to_vmem [thread:$0]  %s3, 16, %s60, [#allocation12]
    $region17: #{tpu_custom_call.1} parent=1 // pred_fallthru
      _
    // Predicated region
    $region18: #{tpu_custom_call.1} parent=1 // pred_check
      _
    $region19: #{tpu_custom_call.1} parent=1 // pred_check_branch
      %64 = sbr.rel (0) target = $region21
    $region20: #{tpu_custom_call.1} parent=1 // pred_region
      %s66 = ssub.s32 128, 128
      %67 = vsyncadd [#allocation12], %s66
      %s69 = sshll.u32 [#allocation13], 4
      %s70 = int_to_ptr.vmem [resolvable:$true] %s69
      %72 = dma.hbm_to_vmem [thread:$0]  %s4, 128, %s70, [#allocation12]
    $region21: #{tpu_custom_call.1} parent=1 // pred_fallthru
      _
    // Predicated region
    $region22: #{tpu_custom_call.1} parent=1 // pred_check
      _
    $region23: #{tpu_custom_call.1} parent=1 // pred_check_branch
      %74 = sbr.rel (0) target = $region25
    $region24: #{tpu_custom_call.1} parent=1 // pred_region
      %s76 = ssub.s32 128, 128
      %77 = vsyncadd [#allocation15], %s76
      %s79 = sshll.u32 [#allocation14], 4
      %s80 = int_to_ptr.vmem [resolvable:$true] %s79
      %82 = dma.hbm_to_vmem [thread:$0]  %s5, 128, %s80, [#allocation15]
    $region25: #{tpu_custom_call.1} parent=1 // pred_fallthru
      _
    // Predicated region
    $region26: #{tpu_custom_call.1} parent=1 // pred_check
      _
    $region27: #{tpu_custom_call.1} parent=1 // pred_check_branch
      %84 = sbr.rel (0) target = $region29
    $region28: #{tpu_custom_call.1} parent=1 // pred_region
      %s86 = ssub.s32 128, 128
      %87 = vsyncadd [#allocation15], %s86
      %s89 = sshll.u32 [#allocation16], 4
      %s90 = int_to_ptr.vmem [resolvable:$true] %s89
      %92 = dma.hbm_to_vmem [thread:$0]  %s6, 128, %s90, [#allocation15]
    $region29: #{tpu_custom_call.1} parent=1 // pred_fallthru
      _
    // Predicated region
    $region30: #{tpu_custom_call.1} parent=1 // pred_check
      _
    $region31: #{tpu_custom_call.1} parent=1 // pred_check_branch
      %94 = sbr.rel (0) target = $region33
    $region32: #{tpu_custom_call.1} parent=1 // pred_region
      %95 = dma.done [#allocation6], 1024
    $region33: #{tpu_custom_call.1} parent=1 // pred_fallthru
      _
    // Predicated region
    $region34: #{tpu_custom_call.1} parent=1 // pred_check
      _
    $region35: #{tpu_custom_call.1} parent=1 // pred_check_branch
      %97 = sbr.rel (0) target = $region37
    $region36: #{tpu_custom_call.1} parent=1 // pred_region
      %98 = dma.done [#allocation9], 2048
    $region37: #{tpu_custom_call.1} parent=1 // pred_fallthru
      _
    // Predicated region
    $region38: #{tpu_custom_call.1} parent=1 // pred_check
      _
    $region39: #{tpu_custom_call.1} parent=1 // pred_check_branch
      %100 = sbr.rel (0) target = $region41
    $region40: #{tpu_custom_call.1} parent=1 // pred_region
      %101 = dma.done [#allocation9], 512
    $region41: #{tpu_custom_call.1} parent=1 // pred_fallthru
      _
    // Predicated region
    $region42: #{tpu_custom_call.1} parent=1 // pred_check
      _
    $region43: #{tpu_custom_call.1} parent=1 // pred_check_branch
      %103 = sbr.rel (0) target = $region45
    $region44: #{tpu_custom_call.1} parent=1 // pred_region
      %104 = dma.done [#allocation12], 16
    $region45: #{tpu_custom_call.1} parent=1 // pred_fallthru
      _
    // Predicated region
    $region46: #{tpu_custom_call.1} parent=1 // pred_check
      _
    $region47: #{tpu_custom_call.1} parent=1 // pred_check_branch
      %106 = sbr.rel (0) target = $region49
    $region48: #{tpu_custom_call.1} parent=1 // pred_region
      %107 = dma.done [#allocation12], 128
    $region49: #{tpu_custom_call.1} parent=1 // pred_fallthru
      _
    // Predicated region
    $region50: #{tpu_custom_call.1} parent=1 // pred_check
      _
    $region51: #{tpu_custom_call.1} parent=1 // pred_check_branch
      %109 = sbr.rel (0) target = $region53
    $region52: #{tpu_custom_call.1} parent=1 // pred_region
      %110 = dma.done [#allocation15], 128
    $region53: #{tpu_custom_call.1} parent=1 // pred_fallthru
      _
    // Predicated region
    $region54: #{tpu_custom_call.1} parent=1 // pred_check
      _
    $region55: #{tpu_custom_call.1} parent=1 // pred_check_branch
      %112 = sbr.rel (0) target = $region57
    $region56: #{tpu_custom_call.1} parent=1 // pred_region
      %113 = dma.done [#allocation15], 128
    $region57: #{tpu_custom_call.1} parent=1 // pred_fallthru
      _
    %p114 = scmp.eq.s32.totalorder 0, 0
    // Predicated region
    $region58: #{tpu_custom_call.1} parent=1 // pred_check
      %p115 = pneg %p114
    $region59: #{tpu_custom_call.1} parent=1 // pred_check_branch
      %117 = sbr.rel (%p115) target = $region61
    $region60: #{tpu_custom_call.1} parent=1 // pred_region
      %vm118 = vcmask 261120
      %119 = vst.msk [vmem:[#allocation2] sm:$0xff] %vm118, 0.0
      %120 = vst.msk [vmem:[#allocation3] sm:$0xff] %vm118, 0.0
      %121 = vst.msk [vmem:[#allocation4] sm:$0xff] %vm118, 0.0
    $region61: #{tpu_custom_call.1} parent=1 // pred_fallthru
      _
    %v122 = vld [vmem:[#allocation8] sm:$0xff]
    %v123 = vld [vmem:[#allocation8 + $0x8] sm:$0xff]
    %v124 = vld [vmem:[#allocation8 + $0x10] sm:$0xff]
    %v125 = vld [vmem:[#allocation8 + $0x18] sm:$0xff]
    %v126 = vld [vmem:[#allocation8 + $0x20] sm:$0xff]
    %v127 = vld [vmem:[#allocation8 + $0x28] sm:$0xff]
    %v128 = vld [vmem:[#allocation8 + $0x30] sm:$0xff]
    %v129 = vld [vmem:[#allocation8 + $0x38] sm:$0xff]
    %v130 = vld [vmem:[#allocation8 + $0x40] sm:$0xff]
    %v131 = vld [vmem:[#allocation8 + $0x48] sm:$0xff]
    %v132 = vld [vmem:[#allocation8 + $0x50] sm:$0xff]
    %v133 = vld [vmem:[#allocation8 + $0x58] sm:$0xff]
    %v134 = vld [vmem:[#allocation8 + $0x60] sm:$0xff]
    %v135 = vld [vmem:[#allocation8 + $0x68] sm:$0xff]
    %v136 = vld [vmem:[#allocation8 + $0x70] sm:$0xff]
    %v137 = vld [vmem:[#allocation8 + $0x78] sm:$0xff]
    %v138 = vld [vmem:[#allocation10] sm:$0xff]
    %v139 = vld [vmem:[#allocation10 + $0x8] sm:$0xff]
    %v140 = vld [vmem:[#allocation10 + $0x10] sm:$0xff]
    %v141 = vld [vmem:[#allocation10 + $0x18] sm:$0xff]
    %v142 = vld [vmem:[#allocation11] sm:$0x1]
    %v143 = vld [vmem:[#allocation16] sm:$0xff]
    %v144 = vsub.s32 %v143, 1
    %s145 = smul.u32 0, 8
    %v146 = vld [vmem:[#allocation5] sm:$0xff]
    %v147 = vld [vmem:[#allocation2] sm:$0xff]
    %vm148 = vcmask 261120
    %v150 = vsel %vm148, %v147, 0
    %152 = vmatprep.subr.mxu0 0.0
    %153 = vmatpush1.msra.mxu0 %v138
    %154 = vmatprep.subr.mxu0 0.0
    %155 = vmatpush1.msra.mxu0 %v139
    %156 = vmatprep.subr.mxu0 0.0
    %157 = vmatpush1.msra.mxu0 %v140
    %158 = vmatprep.subr.mxu0 0.0
    %159 = vmatpush1.msra.mxu0 %v141
    %160 = vmatprep.subr.mxu0 0.0
    %161 = vmatpush1.msra.mxu0 0.0
    %162 = vmatprep.subr.mxu0 0.0
    %163 = vmatpush1.msra.mxu0 0.0
    %164 = vmatprep.subr.mxu0 0.0
    %165 = vmatpush1.msra.mxu0 0.0
    %166 = vmatprep.subr.mxu0 0.0
    %167 = vmatpush1.msra.mxu0 0.0
    %168 = vmatprep.subr.mxu0 0.0
    %169 = vmatpush1.msra.mxu0 0.0
    %170 = vmatprep.subr.mxu0 0.0
    %171 = vmatpush1.msra.mxu0 0.0
    %172 = vmatprep.subr.mxu0 0.0
    %173 = vmatpush1.msra.mxu0 0.0
    %174 = vmatprep.subr.mxu0 0.0
    %175 = vmatpush1.msra.mxu0 0.0
    %176 = vmatprep.subr.mxu0 0.0
    %177 = vmatpush1.msra.mxu0 0.0
    %178 = vmatprep.subr.mxu0 0.0
    %179 = vmatpush1.msra.mxu0 0.0
    %180 = vmatprep.subr.mxu0 0.0
    %181 = vmatpush1.msra.mxu0 0.0
    %182 = vmatprep.subr.mxu0 0.0
    %183 = vmatpush1.msra.mxu0 0.0
    %184 = vmatprep.subr.mxu0 0.0
    %185 = vmatpush1.msra.mxu0 0.0
    %186 = vmatprep.subr.mxu0 0.0
    %187 = vmatpush1.msra.mxu0 0.0
    %188 = vmatprep.subr.mxu0 0.0
    %189 = vmatpush1.msra.mxu0 0.0
    %190 = vmatprep.subr.mxu0 0.0
    %191 = vmatpush1.msra.mxu0 0.0
    %192 = vmatprep.subr.mxu0 0.0
    %193 = vmatpush1.msra.mxu0 0.0
    %194 = vmatprep.subr.mxu0 0.0
    %195 = vmatpush1.msra.mxu0 0.0
    %196 = vmatprep.subr.mxu0 0.0
    %197 = vmatpush1.msra.mxu0 0.0
    %198 = vmatprep.subr.mxu0 0.0
    %199 = vmatpush1.msra.mxu0 0.0
    %200 = vmatprep.subr.mxu0 0.0
    %201 = vmatpush1.msra.mxu0 0.0
    %202 = vmatprep.subr.mxu0 0.0
    %203 = vmatpush1.msra.mxu0 0.0
    %204 = vmatprep.subr.mxu0 0.0
    %205 = vmatpush1.msra.mxu0 0.0
    %206 = vmatprep.subr.mxu0 0.0
    %207 = vmatpush1.msra.mxu0 0.0
    %208 = vmatprep.subr.mxu0 0.0
    %209 = vmatpush1.msra.mxu0 0.0
    %210 = vmatprep.subr.mxu0 0.0
    %211 = vmatpush1.msra.mxu0 0.0
    %212 = vmatprep.subr.mxu0 0.0
    %213 = vmatpush1.msra.mxu0 0.0
    %214 = vmatprep.subr.mxu0 0.0
    %215 = vmatpush1.msra.mxu0 0.0
    %216 = vmatprep.mubr.f32.mxu0 0.0
    %217 = vmatmul.mubr.f32.gmra.mrb[0].mxu0 %v150
    %v218 = vpop.f32.mrb[0].mxu0
    %v219 = vadd.f32 0.0, %v218
    %v220 = vpop.f32.mrb[0].mxu0
    %221 = vdwg.mxu0
    %222 = vmatprep.subr.mxu0 0.0
    %223 = vmatpush1.msra.mxu0 %v122
    %224 = vmatprep.subr.mxu0 0.0
    %225 = vmatpush1.msra.mxu0 %v123
    %226 = vmatprep.subr.mxu0 0.0
    %227 = vmatpush1.msra.mxu0 %v124
    %228 = vmatprep.subr.mxu0 0.0
    %229 = vmatpush1.msra.mxu0 %v125
    %230 = vmatprep.subr.mxu0 0.0
    %231 = vmatpush1.msra.mxu0 %v126
    %232 = vmatprep.subr.mxu0 0.0
    %233 = vmatpush1.msra.mxu0 %v127
    %234 = vmatprep.subr.mxu0 0.0
    %235 = vmatpush1.msra.mxu0 %v128
    %236 = vmatprep.subr.mxu0 0.0
    %237 = vmatpush1.msra.mxu0 %v129
    %238 = vmatprep.subr.mxu0 0.0
    %239 = vmatpush1.msra.mxu0 %v130
    %240 = vmatprep.subr.mxu0 0.0
    %241 = vmatpush1.msra.mxu0 %v131
    %242 = vmatprep.subr.mxu0 0.0
    %243 = vmatpush1.msra.mxu0 %v132
    %244 = vmatprep.subr.mxu0 0.0
    %245 = vmatpush1.msra.mxu0 %v133
    %246 = vmatprep.subr.mxu0 0.0
    %247 = vmatpush1.msra.mxu0 %v134
    %248 = vmatprep.subr.mxu0 0.0
    %249 = vmatpush1.msra.mxu0 %v135
    %250 = vmatprep.subr.mxu0 0.0
    %251 = vmatpush1.msra.mxu0 %v136
    %252 = vmatprep.subr.mxu0 0.0
    %253 = vmatpush1.msra.mxu0 %v137
    %254 = vmatprep.subr.mxu0 0.0
    %255 = vmatpush1.msra.mxu0 0.0
    %256 = vmatprep.subr.mxu0 0.0
    %257 = vmatpush1.msra.mxu0 0.0
    %258 = vmatprep.subr.mxu0 0.0
    %259 = vmatpush1.msra.mxu0 0.0
    %260 = vmatprep.subr.mxu0 0.0
    %261 = vmatpush1.msra.mxu0 0.0
    %262 = vmatprep.subr.mxu0 0.0
    %263 = vmatpush1.msra.mxu0 0.0
    %264 = vmatprep.subr.mxu0 0.0
    %265 = vmatpush1.msra.mxu0 0.0
    %266 = vmatprep.subr.mxu0 0.0
    %267 = vmatpush1.msra.mxu0 0.0
    %268 = vmatprep.subr.mxu0 0.0
    %269 = vmatpush1.msra.mxu0 0.0
    %270 = vmatprep.subr.mxu0 0.0
    %271 = vmatpush1.msra.mxu0 0.0
    %272 = vmatprep.subr.mxu0 0.0
    %273 = vmatpush1.msra.mxu0 0.0
    %274 = vmatprep.subr.mxu0 0.0
    %275 = vmatpush1.msra.mxu0 0.0
    %276 = vmatprep.subr.mxu0 0.0
    %277 = vmatpush1.msra.mxu0 0.0
    %278 = vmatprep.subr.mxu0 0.0
    %279 = vmatpush1.msra.mxu0 0.0
    %280 = vmatprep.subr.mxu0 0.0
    %281 = vmatpush1.msra.mxu0 0.0
    %282 = vmatprep.subr.mxu0 0.0
    %283 = vmatpush1.msra.mxu0 0.0
    %284 = vmatprep.subr.mxu0 0.0
    %285 = vmatpush1.msra.mxu0 0.0
    %286 = vmatprep.mubr.f32.mxu0 0.0
    %287 = vmatmul.mubr.f32.gmra.mrb[0].mxu0 %v146
    %v288 = vpop.f32.mrb[0].mxu0
    %v289 = vadd.f32 %v219, %v288
    %v290 = vpop.f32.mrb[0].mxu0
    %291 = vdwg.mxu0
    %v293 = vlaneseq
    %v294 = vshrl.u32 %v293, 7
    %v295 = vsub.s32 0, %v294
    %v296 = vrot.slane %v142, %v295
    %v298 = vadd.f32 %v289, %v296
    %v299 = vxor.u32 %v298, 2147483648
    %v300 = vmul.f32 %v299, 1.442695
    %v301 = vpow.pop %v300
    %v302 = vadd.f32 %v301, 1.0
    %v303 = vrcp.pop %v302
    %v304 = vmul.f32 1.0, %v303
    %v305 = vtanh.pop %v298
    %v306 = vld [vmem:[#allocation3] sm:$0xff]
    %308 = vrot.lane.b32.xlu0 %v306, 32
    %v309 = vpop.permute.xlu0 %308
    %v311 = vmul.f32 %v304, %v309
    %313 = vrot.lane.b32.xlu0 %v305, 64
    %v314 = vpop.permute.xlu0 %313
    %v316 = vmul.f32 %v304, %v314
    %318 = vrot.lane.b32.xlu0 %v316, 32
    %v319 = vpop.permute.xlu0 %318
    %v321 = vadd.f32 %v311, %v319
    %v322 = vtanh.pop %v321
    %324 = vrot.lane.b32.xlu0 %v322, 64
    %v325 = vpop.permute.xlu0 %324
    %v327 = vmul.f32 %v304, %v325
    %329 = vrot.lane.b32.xlu0 %v321, 96
    %v330 = vpop.permute.xlu0 %329
    %332 = vst.msk [vmem:[#allocation3] sm:$0xff] %vm148, %v330
    %334 = vrot.lane.b32.xlu0 %v327, 32
    %v335 = vpop.permute.xlu0 %334
    %337 = vst.msk [vmem:[#allocation2] sm:$0xff] %vm148, %v335
    %v338 = vstv %s145
    %vm339 = vcmp.eq.s32.totalorder %v144, %v338
    %v340 = vld [vmem:[#allocation4] sm:$0xff]
    %v341 = vsel %vm339, 1, 0
    %342 = vset.pattern.permute.xlu0 0
    %343 = vperm.xlu0 %342, %v341
    %v344 = vpop.permute.xlu0 %343
    %vm345 = vcmp.eq.s32.totalorder %v344, 1
    %347 = vrot.lane.b32.xlu0 %v340, 96
    %v348 = vpop.permute.xlu0 %347
    %v350 = vsel %vm345, %v327, %v348
    %352 = vrot.lane.b32.xlu0 %v350, 32
    %v353 = vpop.permute.xlu0 %352
    %355 = vst.msk [vmem:[#allocation4] sm:$0xff] %vm148, %v353
    %s356 = scalar_lea.vmem [#allocation5], 8
    %v357 = vld [vmem:[%s356] sm:$0xff]
    %v358 = vld [vmem:[#allocation2] sm:$0xff]
    %v360 = vsel %vm148, %v358, 0
    %362 = vmatprep.subr.mxu0 0.0
    %363 = vmatpush1.msra.mxu0 %v138
    %364 = vmatprep.subr.mxu0 0.0
    %365 = vmatpush1.msra.mxu0 %v139
    %366 = vmatprep.subr.mxu0 0.0
    %367 = vmatpush1.msra.mxu0 %v140
    %368 = vmatprep.subr.mxu0 0.0
    %369 = vmatpush1.msra.mxu0 %v141
    %370 = vmatprep.subr.mxu0 0.0
    %371 = vmatpush1.msra.mxu0 0.0
    %372 = vmatprep.subr.mxu0 0.0
    %373 = vmatpush1.msra.mxu0 0.0
    %374 = vmatprep.subr.mxu0 0.0
    %375 = vmatpush1.msra.mxu0 0.0
    %376 = vmatprep.subr.mxu0 0.0
    %377 = vmatpush1.msra.mxu0 0.0
    %378 = vmatprep.subr.mxu0 0.0
    %379 = vmatpush1.msra.mxu0 0.0
    %380 = vmatprep.subr.mxu0 0.0
    %381 = vmatpush1.msra.mxu0 0.0
    %382 = vmatprep.subr.mxu0 0.0
    %383 = vmatpush1.msra.mxu0 0.0
    %384 = vmatprep.subr.mxu0 0.0
    %385 = vmatpush1.msra.mxu0 0.0
    %386 = vmatprep.subr.mxu0 0.0
    %387 = vmatpush1.msra.mxu0 0.0
    %388 = vmatprep.subr.mxu0 0.0
    %389 = vmatpush1.msra.mxu0 0.0
    %390 = vmatprep.subr.mxu0 0.0
    %391 = vmatpush1.msra.mxu0 0.0
    %392 = vmatprep.subr.mxu0 0.0
    %393 = vmatpush1.msra.mxu0 0.0
    %394 = vmatprep.subr.mxu0 0.0
    %395 = vmatpush1.msra.mxu0 0.0
    %396 = vmatprep.subr.mxu0 0.0
    %397 = vmatpush1.msra.mxu0 0.0
    %398 = vmatprep.subr.mxu0 0.0
    %399 = vmatpush1.msra.mxu0 0.0
    %400 = vmatprep.subr.mxu0 0.0
    %401 = vmatpush1.msra.mxu0 0.0
    %402 = vmatprep.subr.mxu0 0.0
    %403 = vmatpush1.msra.mxu0 0.0
    %404 = vmatprep.subr.mxu0 0.0
    %405 = vmatpush1.msra.mxu0 0.0
    %406 = vmatprep.subr.mxu0 0.0
    %407 = vmatpush1.msra.mxu0 0.0
    %408 = vmatprep.subr.mxu0 0.0
    %409 = vmatpush1.msra.mxu0 0.0
    %410 = vmatprep.subr.mxu0 0.0
    %411 = vmatpush1.msra.mxu0 0.0
    %412 = vmatprep.subr.mxu0 0.0
    %413 = vmatpush1.msra.mxu0 0.0
    %414 = vmatprep.subr.mxu0 0.0
    %415 = vmatpush1.msra.mxu0 0.0
    %416 = vmatprep.subr.mxu0 0.0
    %417 = vmatpush1.msra.mxu0 0.0
    %418 = vmatprep.subr.mxu0 0.0
    %419 = vmatpush1.msra.mxu0 0.0
    %420 = vmatprep.subr.mxu0 0.0
    %421 = vmatpush1.msra.mxu0 0.0
    %422 = vmatprep.subr.mxu0 0.0
    %423 = vmatpush1.msra.mxu0 0.0
    %424 = vmatprep.subr.mxu0 0.0
    %425 = vmatpush1.msra.mxu0 0.0
    %426 = vmatprep.mubr.f32.mxu0 0.0
    %427 = vmatmul.mubr.f32.gmra.mrb[0].mxu0 %v360
    %v428 = vpop.f32.mrb[0].mxu0
    %v429 = vadd.f32 0.0, %v428
    %v430 = vpop.f32.mrb[0].mxu0
    %431 = vdwg.mxu0
    %432 = vmatprep.subr.mxu0 0.0
    %433 = vmatpush1.msra.mxu0 %v122
    %434 = vmatprep.subr.mxu0 0.0
    %435 = vmatpush1.msra.mxu0 %v123
    %436 = vmatprep.subr.mxu0 0.0
    %437 = vmatpush1.msra.mxu0 %v124
    %438 = vmatprep.subr.mxu0 0.0
    %439 = vmatpush1.msra.mxu0 %v125
    %440 = vmatprep.subr.mxu0 0.0
    %441 = vmatpush1.msra.mxu0 %v126
    %442 = vmatprep.subr.mxu0 0.0
    %443 = vmatpush1.msra.mxu0 %v127
    %444 = vmatprep.subr.mxu0 0.0
    %445 = vmatpush1.msra.mxu0 %v128
    %446 = vmatprep.subr.mxu0 0.0
    %447 = vmatpush1.msra.mxu0 %v129
    %448 = vmatprep.subr.mxu0 0.0
    %449 = vmatpush1.msra.mxu0 %v130
    %450 = vmatprep.subr.mxu0 0.0
    %451 = vmatpush1.msra.mxu0 %v131
    %452 = vmatprep.subr.mxu0 0.0
    %453 = vmatpush1.msra.mxu0 %v132
    %454 = vmatprep.subr.mxu0 0.0
    %455 = vmatpush1.msra.mxu0 %v133
    %456 = vmatprep.subr.mxu0 0.0
    %457 = vmatpush1.msra.mxu0 %v134
    %458 = vmatprep.subr.mxu0 0.0
    %459 = vmatpush1.msra.mxu0 %v135
    %460 = vmatprep.subr.mxu0 0.0
    %461 = vmatpush1.msra.mxu0 %v136
    %462 = vmatprep.subr.mxu0 0.0
    %463 = vmatpush1.msra.mxu0 %v137
    %464 = vmatprep.subr.mxu0 0.0
    %465 = vmatpush1.msra.mxu0 0.0
    %466 = vmatprep.subr.mxu0 0.0
    %467 = vmatpush1.msra.mxu0 0.0
    %468 = vmatprep.subr.mxu0 0.0
    %469 = vmatpush1.msra.mxu0 0.0
    %470 = vmatprep.subr.mxu0 0.0
    %471 = vmatpush1.msra.mxu0 0.0
    %472 = vmatprep.subr.mxu0 0.0
    %473 = vmatpush1.msra.mxu0 0.0
    %474 = vmatprep.subr.mxu0 0.0
    %475 = vmatpush1.msra.mxu0 0.0
    %476 = vmatprep.subr.mxu0 0.0
    %477 = vmatpush1.msra.mxu0 0.0
    %478 = vmatprep.subr.mxu0 0.0
    %479 = vmatpush1.msra.mxu0 0.0
    %480 = vmatprep.subr.mxu0 0.0
    %481 = vmatpush1.msra.mxu0 0.0
    %482 = vmatprep.subr.mxu0 0.0
    %483 = vmatpush1.msra.mxu0 0.0
    %484 = vmatprep.subr.mxu0 0.0
    %485 = vmatpush1.msra.mxu0 0.0
    %486 = vmatprep.subr.mxu0 0.0
    %487 = vmatpush1.msra.mxu0 0.0
    %488 = vmatprep.subr.mxu0 0.0
    %489 = vmatpush1.msra.mxu0 0.0
    %490 = vmatprep.subr.mxu0 0.0
    %491 = vmatpush1.msra.mxu0 0.0
    %492 = vmatprep.subr.mxu0 0.0
    %493 = vmatpush1.msra.mxu0 0.0
    %494 = vmatprep.subr.mxu0 0.0
    %495 = vmatpush1.msra.mxu0 0.0
    %496 = vmatprep.mubr.f32.mxu0 0.0
    %497 = vmatmul.mubr.f32.gmra.mrb[0].mxu0 %v357
    %v498 = vpop.f32.mrb[0].mxu0
    %v499 = vadd.f32 %v429, %v498
    %v500 = vpop.f32.mrb[0].mxu0
    %501 = vdwg.mxu0
    %v502 = vadd.f32 %v499, %v296
    %v503 = vxor.u32 %v502, 2147483648
    %v504 = vmul.f32 %v503, 1.442695
    %v505 = vpow.pop %v504
    %v506 = vadd.f32 %v505, 1.0
    %v507 = vrcp.pop %v506
    %v508 = vmul.f32 1.0, %v507
    %v509 = vtanh.pop %v502
    %v510 = vld [vmem:[#allocation3] sm:$0xff]
    %512 = vrot.lane.b32.xlu0 %v510, 32
    %v513 = vpop.permute.xlu0 %512
    %v515 = vmul.f32 %v508, %v513
    %517 = vrot.lane.b32.xlu0 %v509, 64
    %v518 = vpop.permute.xlu0 %517
    %v520 = vmul.f32 %v508, %v518
    %522 = vrot.lane.b32.xlu0 %v520, 32
    %v523 = vpop.permute.xlu0 %522
    %v525 = vadd.f32 %v515, %v523
    %v526 = vtanh.pop %v525
    %528 = vrot.lane.b32.xlu0 %v526, 64
    %v529 = vpop.permute.xlu0 %528
    %v531 = vmul.f32 %v508, %v529
    %533 = vrot.lane.b32.xlu0 %v525, 96
    %v534 = vpop.permute.xlu0 %533
    %536 = vst.msk [vmem:[#allocation3] sm:$0xff] %vm148, %v534
    %538 = vrot.lane.b32.xlu0 %v531, 32
    %v539 = vpop.permute.xlu0 %538
    %541 = vst.msk [vmem:[#allocation2] sm:$0xff] %vm148, %v539
    %s542 = sadd.s32 %s145, 1
    %v543 = vstv %s542
    %vm544 = vcmp.eq.s32.totalorder %v144, %v543
    %v545 = vld [vmem:[#allocation4] sm:$0xff]
    %v546 = vsel %vm544, 1, 0
    %547 = vset.pattern.permute.xlu0 0
    %548 = vperm.xlu0 %547, %v546
    %v549 = vpop.permute.xlu0 %548
    %vm550 = vcmp.eq.s32.totalorder %v549, 1
    %552 = vrot.lane.b32.xlu0 %v545, 96
    %v553 = vpop.permute.xlu0 %552
    %v555 = vsel %vm550, %v531, %v553
    %557 = vrot.lane.b32.xlu0 %v555, 32
    %v558 = vpop.permute.xlu0 %557
    %560 = vst.msk [vmem:[#allocation4] sm:$0xff] %vm148, %v558
    %s561 = scalar_lea.vmem [#allocation5], 16
    %v562 = vld [vmem:[%s561] sm:$0xff]
    %v563 = vld [vmem:[#allocation2] sm:$0xff]
    %v565 = vsel %vm148, %v563, 0
    %567 = vmatprep.subr.mxu0 0.0
    %568 = vmatpush1.msra.mxu0 %v138
    %569 = vmatprep.subr.mxu0 0.0
    %570 = vmatpush1.msra.mxu0 %v139
    %571 = vmatprep.subr.mxu0 0.0
    %572 = vmatpush1.msra.mxu0 %v140
    %573 = vmatprep.subr.mxu0 0.0
    %574 = vmatpush1.msra.mxu0 %v141
    %575 = vmatprep.subr.mxu0 0.0
    %576 = vmatpush1.msra.mxu0 0.0
    %577 = vmatprep.subr.mxu0 0.0
    %578 = vmatpush1.msra.mxu0 0.0
    %579 = vmatprep.subr.mxu0 0.0
    %580 = vmatpush1.msra.mxu0 0.0
    %581 = vmatprep.subr.mxu0 0.0
    %582 = vmatpush1.msra.mxu0 0.0
    %583 = vmatprep.subr.mxu0 0.0
    %584 = vmatpush1.msra.mxu0 0.0
    %585 = vmatprep.subr.mxu0 0.0
    %586 = vmatpush1.msra.mxu0 0.0
    %587 = vmatprep.subr.mxu0 0.0
    %588 = vmatpush1.msra.mxu0 0.0
    %589 = vmatprep.subr.mxu0 0.0
    %590 = vmatpush1.msra.mxu0 0.0
    %591 = vmatprep.subr.mxu0 0.0
    %592 = vmatpush1.msra.mxu0 0.0
    %593 = vmatprep.subr.mxu0 0.0
    %594 = vmatpush1.msra.mxu0 0.0
    %595 = vmatprep.subr.mxu0 0.0
    %596 = vmatpush1.msra.mxu0 0.0
    %597 = vmatprep.subr.mxu0 0.0
    %598 = vmatpush1.msra.mxu0 0.0
    %599 = vmatprep.subr.mxu0 0.0
    %600 = vmatpush1.msra.mxu0 0.0
    %601 = vmatprep.subr.mxu0 0.0
    %602 = vmatpush1.msra.mxu0 0.0
    %603 = vmatprep.subr.mxu0 0.0
    %604 = vmatpush1.msra.mxu0 0.0
    %605 = vmatprep.subr.mxu0 0.0
    %606 = vmatpush1.msra.mxu0 0.0
    %607 = vmatprep.subr.mxu0 0.0
    %608 = vmatpush1.msra.mxu0 0.0
    %609 = vmatprep.subr.mxu0 0.0
    %610 = vmatpush1.msra.mxu0 0.0
    %611 = vmatprep.subr.mxu0 0.0
    %612 = vmatpush1.msra.mxu0 0.0
    %613 = vmatprep.subr.mxu0 0.0
    %614 = vmatpush1.msra.mxu0 0.0
    %615 = vmatprep.subr.mxu0 0.0
    %616 = vmatpush1.msra.mxu0 0.0
    %617 = vmatprep.subr.mxu0 0.0
    %618 = vmatpush1.msra.mxu0 0.0
    %619 = vmatprep.subr.mxu0 0.0
    %620 = vmatpush1.msra.mxu0 0.0
    %621 = vmatprep.subr.mxu0 0.0
    %622 = vmatpush1.msra.mxu0 0.0
    %623 = vmatprep.subr.mxu0 0.0
    %624 = vmatpush1.msra.mxu0 0.0
    %625 = vmatprep.subr.mxu0 0.0
    %626 = vmatpush1.msra.mxu0 0.0
    %627 = vmatprep.subr.mxu0 0.0
    %628 = vmatpush1.msra.mxu0 0.0
    %629 = vmatprep.subr.mxu0 0.0
    %630 = vmatpush1.msra.mxu0 0.0
    %631 = vmatprep.mubr.f32.mxu0 0.0
    %632 = vmatmul.mubr.f32.gmra.mrb[0].mxu0 %v565
    %v633 = vpop.f32.mrb[0].mxu0
    %v634 = vadd.f32 0.0, %v633
    %v635 = vpop.f32.mrb[0].mxu0
    %636 = vdwg.mxu0
    %637 = vmatprep.subr.mxu0 0.0
    %638 = vmatpush1.msra.mxu0 %v122
    %639 = vmatprep.subr.mxu0 0.0
    %640 = vmatpush1.msra.mxu0 %v123
    %641 = vmatprep.subr.mxu0 0.0
    %642 = vmatpush1.msra.mxu0 %v124
    %643 = vmatprep.subr.mxu0 0.0
    %644 = vmatpush1.msra.mxu0 %v125
    %645 = vmatprep.subr.mxu0 0.0
    %646 = vmatpush1.msra.mxu0 %v126
    %647 = vmatprep.subr.mxu0 0.0
    %648 = vmatpush1.msra.mxu0 %v127
    %649 = vmatprep.subr.mxu0 0.0
    %650 = vmatpush1.msra.mxu0 %v128
    %651 = vmatprep.subr.mxu0 0.0
    %652 = vmatpush1.msra.mxu0 %v129
    %653 = vmatprep.subr.mxu0 0.0
    %654 = vmatpush1.msra.mxu0 %v130
    %655 = vmatprep.subr.mxu0 0.0
    %656 = vmatpush1.msra.mxu0 %v131
    %657 = vmatprep.subr.mxu0 0.0
    %658 = vmatpush1.msra.mxu0 %v132
    %659 = vmatprep.subr.mxu0 0.0
    %660 = vmatpush1.msra.mxu0 %v133
    %661 = vmatprep.subr.mxu0 0.0
    %662 = vmatpush1.msra.mxu0 %v134
    %663 = vmatprep.subr.mxu0 0.0
    %664 = vmatpush1.msra.mxu0 %v135
    %665 = vmatprep.subr.mxu0 0.0
    %666 = vmatpush1.msra.mxu0 %v136
    %667 = vmatprep.subr.mxu0 0.0
    %668 = vmatpush1.msra.mxu0 %v137
    %669 = vmatprep.subr.mxu0 0.0
    %670 = vmatpush1.msra.mxu0 0.0
    %671 = vmatprep.subr.mxu0 0.0
    %672 = vmatpush1.msra.mxu0 0.0
    %673 = vmatprep.subr.mxu0 0.0
    %674 = vmatpush1.msra.mxu0 0.0
    %675 = vmatprep.subr.mxu0 0.0
    %676 = vmatpush1.msra.mxu0 0.0
    %677 = vmatprep.subr.mxu0 0.0
    %678 = vmatpush1.msra.mxu0 0.0
    %679 = vmatprep.subr.mxu0 0.0
    %680 = vmatpush1.msra.mxu0 0.0
    %681 = vmatprep.subr.mxu0 0.0
    %682 = vmatpush1.msra.mxu0 0.0
    %683 = vmatprep.subr.mxu0 0.0
    %684 = vmatpush1.msra.mxu0 0.0
    %685 = vmatprep.subr.mxu0 0.0
    %686 = vmatpush1.msra.mxu0 0.0
    %687 = vmatprep.subr.mxu0 0.0
    %688 = vmatpush1.msra.mxu0 0.0
    %689 = vmatprep.subr.mxu0 0.0
    %690 = vmatpush1.msra.mxu0 0.0
    %691 = vmatprep.subr.mxu0 0.0
    %692 = vmatpush1.msra.mxu0 0.0
    %693 = vmatprep.subr.mxu0 0.0
    %694 = vmatpush1.msra.mxu0 0.0
    %695 = vmatprep.subr.mxu0 0.0
    %696 = vmatpush1.msra.mxu0 0.0
    %697 = vmatprep.subr.mxu0 0.0
    %698 = vmatpush1.msra.mxu0 0.0
    %699 = vmatprep.subr.mxu0 0.0
    %700 = vmatpush1.msra.mxu0 0.0
    %701 = vmatprep.mubr.f32.mxu0 0.0
    %702 = vmatmul.mubr.f32.gmra.mrb[0].mxu0 %v562
    %v703 = vpop.f32.mrb[0].mxu0
    %v704 = vadd.f32 %v634, %v703
    %v705 = vpop.f32.mrb[0].mxu0
    %706 = vdwg.mxu0
    %v707 = vadd.f32 %v704, %v296
    %v708 = vxor.u32 %v707, 2147483648
    %v709 = vmul.f32 %v708, 1.442695
    %v710 = vpow.pop %v709
    %v711 = vadd.f32 %v710, 1.0
    %v712 = vrcp.pop %v711
    %v713 = vmul.f32 1.0, %v712
    %v714 = vtanh.pop %v707
    %v715 = vld [vmem:[#allocation3] sm:$0xff]
    %717 = vrot.lane.b32.xlu0 %v715, 32
    %v718 = vpop.permute.xlu0 %717
    %v720 = vmul.f32 %v713, %v718
    %722 = vrot.lane.b32.xlu0 %v714, 64
    %v723 = vpop.permute.xlu0 %722
    %v725 = vmul.f32 %v713, %v723
    %727 = vrot.lane.b32.xlu0 %v725, 32
    %v728 = vpop.permute.xlu0 %727
    %v730 = vadd.f32 %v720, %v728
    %v731 = vtanh.pop %v730
    %733 = vrot.lane.b32.xlu0 %v731, 64
    %v734 = vpop.permute.xlu0 %733
    %v736 = vmul.f32 %v713, %v734
    %738 = vrot.lane.b32.xlu0 %v730, 96
    %v739 = vpop.permute.xlu0 %738
    %741 = vst.msk [vmem:[#allocation3] sm:$0xff] %vm148, %v739
    %743 = vrot.lane.b32.xlu0 %v736, 32
    %v744 = vpop.permute.xlu0 %743
    %746 = vst.msk [vmem:[#allocation2] sm:$0xff] %vm148, %v744
    %s747 = sadd.s32 %s145, 2
    %v748 = vstv %s747
    %vm749 = vcmp.eq.s32.totalorder %v144, %v748
    %v750 = vld [vmem:[#allocation4] sm:$0xff]
    %v751 = vsel %vm749, 1, 0
    %752 = vset.pattern.permute.xlu0 0
    %753 = vperm.xlu0 %752, %v751
    %v754 = vpop.permute.xlu0 %753
    %vm755 = vcmp.eq.s32.totalorder %v754, 1
    %757 = vrot.lane.b32.xlu0 %v750, 96
    %v758 = vpop.permute.xlu0 %757
    %v760 = vsel %vm755, %v736, %v758
    %762 = vrot.lane.b32.xlu0 %v760, 32
    %v763 = vpop.permute.xlu0 %762
    %765 = vst.msk [vmem:[#allocation4] sm:$0xff] %vm148, %v763
    %s766 = scalar_lea.vmem [#allocation5], 24
    %v767 = vld [vmem:[%s766] sm:$0xff]
    %v768 = vld [vmem:[#allocation2] sm:$0xff]
    %v770 = vsel %vm148, %v768, 0
    %772 = vmatprep.subr.mxu0 0.0
    %773 = vmatpush1.msra.mxu0 %v138
    %774 = vmatprep.subr.mxu0 0.0
    %775 = vmatpush1.msra.mxu0 %v139
    %776 = vmatprep.subr.mxu0 0.0
    %777 = vmatpush1.msra.mxu0 %v140
    %778 = vmatprep.subr.mxu0 0.0
    %779 = vmatpush1.msra.mxu0 %v141
    %780 = vmatprep.subr.mxu0 0.0
    %781 = vmatpush1.msra.mxu0 0.0
    %782 = vmatprep.subr.mxu0 0.0
    %783 = vmatpush1.msra.mxu0 0.0
    %784 = vmatprep.subr.mxu0 0.0
    %785 = vmatpush1.msra.mxu0 0.0
    %786 = vmatprep.subr.mxu0 0.0
    %787 = vmatpush1.msra.mxu0 0.0
    %788 = vmatprep.subr.mxu0 0.0
    %789 = vmatpush1.msra.mxu0 0.0
    %790 = vmatprep.subr.mxu0 0.0
    %791 = vmatpush1.msra.mxu0 0.0
    %792 = vmatprep.subr.mxu0 0.0
    %793 = vmatpush1.msra.mxu0 0.0
    %794 = vmatprep.subr.mxu0 0.0
    %795 = vmatpush1.msra.mxu0 0.0
    %796 = vmatprep.subr.mxu0 0.0
    %797 = vmatpush1.msra.mxu0 0.0
    %798 = vmatprep.subr.mxu0 0.0
    %799 = vmatpush1.msra.mxu0 0.0
    %800 = vmatprep.subr.mxu0 0.0
    %801 = vmatpush1.msra.mxu0 0.0
    %802 = vmatprep.subr.mxu0 0.0
    %803 = vmatpush1.msra.mxu0 0.0
    %804 = vmatprep.subr.mxu0 0.0
    %805 = vmatpush1.msra.mxu0 0.0
    %806 = vmatprep.subr.mxu0 0.0
    %807 = vmatpush1.msra.mxu0 0.0
    %808 = vmatprep.subr.mxu0 0.0
    %809 = vmatpush1.msra.mxu0 0.0
    %810 = vmatprep.subr.mxu0 0.0
    %811 = vmatpush1.msra.mxu0 0.0
    %812 = vmatprep.subr.mxu0 0.0
    %813 = vmatpush1.msra.mxu0 0.0
    %814 = vmatprep.subr.mxu0 0.0
    %815 = vmatpush1.msra.mxu0 0.0
    %816 = vmatprep.subr.mxu0 0.0
    %817 = vmatpush1.msra.mxu0 0.0
    %818 = vmatprep.subr.mxu0 0.0
    %819 = vmatpush1.msra.mxu0 0.0
    %820 = vmatprep.subr.mxu0 0.0
    %821 = vmatpush1.msra.mxu0 0.0
    %822 = vmatprep.subr.mxu0 0.0
    %823 = vmatpush1.msra.mxu0 0.0
    %824 = vmatprep.subr.mxu0 0.0
    %825 = vmatpush1.msra.mxu0 0.0
    %826 = vmatprep.subr.mxu0 0.0
    %827 = vmatpush1.msra.mxu0 0.0
    %828 = vmatprep.subr.mxu0 0.0
    %829 = vmatpush1.msra.mxu0 0.0
    %830 = vmatprep.subr.mxu0 0.0
    %831 = vmatpush1.msra.mxu0 0.0
    %832 = vmatprep.subr.mxu0 0.0
    %833 = vmatpush1.msra.mxu0 0.0
    %834 = vmatprep.subr.mxu0 0.0
    %835 = vmatpush1.msra.mxu0 0.0
    %836 = vmatprep.mubr.f32.mxu0 0.0
    %837 = vmatmul.mubr.f32.gmra.mrb[0].mxu0 %v770
    %v838 = vpop.f32.mrb[0].mxu0
    %v839 = vadd.f32 0.0, %v838
    %v840 = vpop.f32.mrb[0].mxu0
    %841 = vdwg.mxu0
    %842 = vmatprep.subr.mxu0 0.0
    %843 = vmatpush1.msra.mxu0 %v122
    %844 = vmatprep.subr.mxu0 0.0
    %845 = vmatpush1.msra.mxu0 %v123
    %846 = vmatprep.subr.mxu0 0.0
    %847 = vmatpush1.msra.mxu0 %v124
    %848 = vmatprep.subr.mxu0 0.0
    %849 = vmatpush1.msra.mxu0 %v125
    %850 = vmatprep.subr.mxu0 0.0
    %851 = vmatpush1.msra.mxu0 %v126
    %852 = vmatprep.subr.mxu0 0.0
    %853 = vmatpush1.msra.mxu0 %v127
    %854 = vmatprep.subr.mxu0 0.0
    %855 = vmatpush1.msra.mxu0 %v128
    %856 = vmatprep.subr.mxu0 0.0
    %857 = vmatpush1.msra.mxu0 %v129
    %858 = vmatprep.subr.mxu0 0.0
    %859 = vmatpush1.msra.mxu0 %v130
    %860 = vmatprep.subr.mxu0 0.0
    %861 = vmatpush1.msra.mxu0 %v131
    %862 = vmatprep.subr.mxu0 0.0
    %863 = vmatpush1.msra.mxu0 %v132
    %864 = vmatprep.subr.mxu0 0.0
    %865 = vmatpush1.msra.mxu0 %v133
    %866 = vmatprep.subr.mxu0 0.0
    %867 = vmatpush1.msra.mxu0 %v134
    %868 = vmatprep.subr.mxu0 0.0
    %869 = vmatpush1.msra.mxu0 %v135
    %870 = vmatprep.subr.mxu0 0.0
    %871 = vmatpush1.msra.mxu0 %v136
    %872 = vmatprep.subr.mxu0 0.0
    %873 = vmatpush1.msra.mxu0 %v137
    %874 = vmatprep.subr.mxu0 0.0
    %875 = vmatpush1.msra.mxu0 0.0
    %876 = vmatprep.subr.mxu0 0.0
    %877 = vmatpush1.msra.mxu0 0.0
    %878 = vmatprep.subr.mxu0 0.0
    %879 = vmatpush1.msra.mxu0 0.0
    %880 = vmatprep.subr.mxu0 0.0
    %881 = vmatpush1.msra.mxu0 0.0
    %882 = vmatprep.subr.mxu0 0.0
    %883 = vmatpush1.msra.mxu0 0.0
    %884 = vmatprep.subr.mxu0 0.0
    %885 = vmatpush1.msra.mxu0 0.0
    %886 = vmatprep.subr.mxu0 0.0
    %887 = vmatpush1.msra.mxu0 0.0
    %888 = vmatprep.subr.mxu0 0.0
    %889 = vmatpush1.msra.mxu0 0.0
    %890 = vmatprep.subr.mxu0 0.0
    %891 = vmatpush1.msra.mxu0 0.0
    %892 = vmatprep.subr.mxu0 0.0
    %893 = vmatpush1.msra.mxu0 0.0
    %894 = vmatprep.subr.mxu0 0.0
    %895 = vmatpush1.msra.mxu0 0.0
    %896 = vmatprep.subr.mxu0 0.0
    %897 = vmatpush1.msra.mxu0 0.0
    %898 = vmatprep.subr.mxu0 0.0
    %899 = vmatpush1.msra.mxu0 0.0
    %900 = vmatprep.subr.mxu0 0.0
    %901 = vmatpush1.msra.mxu0 0.0
    %902 = vmatprep.subr.mxu0 0.0
    %903 = vmatpush1.msra.mxu0 0.0
    %904 = vmatprep.subr.mxu0 0.0
    %905 = vmatpush1.msra.mxu0 0.0
    %906 = vmatprep.mubr.f32.mxu0 0.0
    %907 = vmatmul.mubr.f32.gmra.mrb[0].mxu0 %v767
    %v908 = vpop.f32.mrb[0].mxu0
    %v909 = vadd.f32 %v839, %v908
    %v910 = vpop.f32.mrb[0].mxu0
    %911 = vdwg.mxu0
    %v912 = vadd.f32 %v909, %v296
    %v913 = vxor.u32 %v912, 2147483648
    %v914 = vmul.f32 %v913, 1.442695
    %v915 = vpow.pop %v914
    %v916 = vadd.f32 %v915, 1.0
    %v917 = vrcp.pop %v916
    %v918 = vmul.f32 1.0, %v917
    %v919 = vtanh.pop %v912
    %v920 = vld [vmem:[#allocation3] sm:$0xff]
    %922 = vrot.lane.b32.xlu0 %v920, 32
    %v923 = vpop.permute.xlu0 %922
    %v925 = vmul.f32 %v918, %v923
    %927 = vrot.lane.b32.xlu0 %v919, 64
    %v928 = vpop.permute.xlu0 %927
    %v930 = vmul.f32 %v918, %v928
    %932 = vrot.lane.b32.xlu0 %v930, 32
    %v933 = vpop.permute.xlu0 %932
    %v935 = vadd.f32 %v925, %v933
    %v936 = vtanh.pop %v935
    %938 = vrot.lane.b32.xlu0 %v936, 64
    %v939 = vpop.permute.xlu0 %938
    %v941 = vmul.f32 %v918, %v939
    %943 = vrot.lane.b32.xlu0 %v935, 96
    %v944 = vpop.permute.xlu0 %943
    %946 = vst.msk [vmem:[#allocation3] sm:$0xff] %vm148, %v944
    %948 = vrot.lane.b32.xlu0 %v941, 32
    %v949 = vpop.permute.xlu0 %948
    %951 = vst.msk [vmem:[#allocation2] sm:$0xff] %vm148, %v949
    %s952 = sadd.s32 %s145, 3
    %v953 = vstv %s952
    %vm954 = vcmp.eq.s32.totalorder %v144, %v953
    %v955 = vld [vmem:[#allocation4] sm:$0xff]
    %v956 = vsel %vm954, 1, 0
    %957 = vset.pattern.permute.xlu0 0
    %958 = vperm.xlu0 %957, %v956
    %v959 = vpop.permute.xlu0 %958
    %vm960 = vcmp.eq.s32.totalorder %v959, 1
    %962 = vrot.lane.b32.xlu0 %v955, 96
    %v963 = vpop.permute.xlu0 %962
    %v965 = vsel %vm960, %v941, %v963
    %967 = vrot.lane.b32.xlu0 %v965, 32
    %v968 = vpop.permute.xlu0 %967
    %970 = vst.msk [vmem:[#allocation4] sm:$0xff] %vm148, %v968
    %s971 = scalar_lea.vmem [#allocation5], 32
    %v972 = vld [vmem:[%s971] sm:$0xff]
    %v973 = vld [vmem:[#allocation2] sm:$0xff]
    %v975 = vsel %vm148, %v973, 0
    %977 = vmatprep.subr.mxu0 0.0
    %978 = vmatpush1.msra.mxu0 %v138
    %979 = vmatprep.subr.mxu0 0.0
    %980 = vmatpush1.msra.mxu0 %v139
    %981 = vmatprep.subr.mxu0 0.0
    %982 = vmatpush1.msra.mxu0 %v140
    %983 = vmatprep.subr.mxu0 0.0
    %984 = vmatpush1.msra.mxu0 %v141
    %985 = vmatprep.subr.mxu0 0.0
    %986 = vmatpush1.msra.mxu0 0.0
    %987 = vmatprep.subr.mxu0 0.0
    %988 = vmatpush1.msra.mxu0 0.0
    %989 = vmatprep.subr.mxu0 0.0
    %990 = vmatpush1.msra.mxu0 0.0
    %991 = vmatprep.subr.mxu0 0.0
    %992 = vmatpush1.msra.mxu0 0.0
    %993 = vmatprep.subr.mxu0 0.0
    %994 = vmatpush1.msra.mxu0 0.0
    %995 = vmatprep.subr.mxu0 0.0
    %996 = vmatpush1.msra.mxu0 0.0
    %997 = vmatprep.subr.mxu0 0.0
    %998 = vmatpush1.msra.mxu0 0.0
    %999 = vmatprep.subr.mxu0 0.0
    %1000 = vmatpush1.msra.mxu0 0.0
    %1001 = vmatprep.subr.mxu0 0.0
    %1002 = vmatpush1.msra.mxu0 0.0
    %1003 = vmatprep.subr.mxu0 0.0
    %1004 = vmatpush1.msra.mxu0 0.0
    %1005 = vmatprep.subr.mxu0 0.0
    %1006 = vmatpush1.msra.mxu0 0.0
    %1007 = vmatprep.subr.mxu0 0.0
    %1008 = vmatpush1.msra.mxu0 0.0
    %1009 = vmatprep.subr.mxu0 0.0
    %1010 = vmatpush1.msra.mxu0 0.0
    %1011 = vmatprep.subr.mxu0 0.0
    %1012 = vmatpush1.msra.mxu0 0.0
    %1013 = vmatprep.subr.mxu0 0.0
    %1014 = vmatpush1.msra.mxu0 0.0
    %1015 = vmatprep.subr.mxu0 0.0
    %1016 = vmatpush1.msra.mxu0 0.0
    %1017 = vmatprep.subr.mxu0 0.0
    %1018 = vmatpush1.msra.mxu0 0.0
    %1019 = vmatprep.subr.mxu0 0.0
    %1020 = vmatpush1.msra.mxu0 0.0
    %1021 = vmatprep.subr.mxu0 0.0
    %1022 = vmatpush1.msra.mxu0 0.0
    %1023 = vmatprep.subr.mxu0 0.0
    %1024 = vmatpush1.msra.mxu0 0.0
    %1025 = vmatprep.subr.mxu0 0.0
    %1026 = vmatpush1.msra.mxu0 0.0
    %1027 = vmatprep.subr.mxu0 0.0
    %1028 = vmatpush1.msra.mxu0 0.0
    %1029 = vmatprep.subr.mxu0 0.0
    %1030 = vmatpush1.msra.mxu0 0.0
    %1031 = vmatprep.subr.mxu0 0.0
    %1032 = vmatpush1.msra.mxu0 0.0
    %1033 = vmatprep.subr.mxu0 0.0
    %1034 = vmatpush1.msra.mxu0 0.0
    %1035 = vmatprep.subr.mxu0 0.0
    %1036 = vmatpush1.msra.mxu0 0.0
    %1037 = vmatprep.subr.mxu0 0.0
    %1038 = vmatpush1.msra.mxu0 0.0
    %1039 = vmatprep.subr.mxu0 0.0
    %1040 = vmatpush1.msra.mxu0 0.0
    %1041 = vmatprep.mubr.f32.mxu0 0.0
    %1042 = vmatmul.mubr.f32.gmra.mrb[0].mxu0 %v975
    %v1043 = vpop.f32.mrb[0].mxu0
    %v1044 = vadd.f32 0.0, %v1043
    %v1045 = vpop.f32.mrb[0].mxu0
    %1046 = vdwg.mxu0
    %1047 = vmatprep.subr.mxu0 0.0
    %1048 = vmatpush1.msra.mxu0 %v122
    %1049 = vmatprep.subr.mxu0 0.0
    %1050 = vmatpush1.msra.mxu0 %v123
    %1051 = vmatprep.subr.mxu0 0.0
    %1052 = vmatpush1.msra.mxu0 %v124
    %1053 = vmatprep.subr.mxu0 0.0
    %1054 = vmatpush1.msra.mxu0 %v125
    %1055 = vmatprep.subr.mxu0 0.0
    %1056 = vmatpush1.msra.mxu0 %v126
    %1057 = vmatprep.subr.mxu0 0.0
    %1058 = vmatpush1.msra.mxu0 %v127
    %1059 = vmatprep.subr.mxu0 0.0
    %1060 = vmatpush1.msra.mxu0 %v128
    %1061 = vmatprep.subr.mxu0 0.0
    %1062 = vmatpush1.msra.mxu0 %v129
    %1063 = vmatprep.subr.mxu0 0.0
    %1064 = vmatpush1.msra.mxu0 %v130
    %1065 = vmatprep.subr.mxu0 0.0
    %1066 = vmatpush1.msra.mxu0 %v131
    %1067 = vmatprep.subr.mxu0 0.0
    %1068 = vmatpush1.msra.mxu0 %v132
    %1069 = vmatprep.subr.mxu0 0.0
    %1070 = vmatpush1.msra.mxu0 %v133
    %1071 = vmatprep.subr.mxu0 0.0
    %1072 = vmatpush1.msra.mxu0 %v134
    %1073 = vmatprep.subr.mxu0 0.0
    %1074 = vmatpush1.msra.mxu0 %v135
    %1075 = vmatprep.subr.mxu0 0.0
    %1076 = vmatpush1.msra.mxu0 %v136
    %1077 = vmatprep.subr.mxu0 0.0
    %1078 = vmatpush1.msra.mxu0 %v137
    %1079 = vmatprep.subr.mxu0 0.0
    %1080 = vmatpush1.msra.mxu0 0.0
    %1081 = vmatprep.subr.mxu0 0.0
    %1082 = vmatpush1.msra.mxu0 0.0
    %1083 = vmatprep.subr.mxu0 0.0
    %1084 = vmatpush1.msra.mxu0 0.0
    %1085 = vmatprep.subr.mxu0 0.0
    %1086 = vmatpush1.msra.mxu0 0.0
    %1087 = vmatprep.subr.mxu0 0.0
    %1088 = vmatpush1.msra.mxu0 0.0
    %1089 = vmatprep.subr.mxu0 0.0
    %1090 = vmatpush1.msra.mxu0 0.0
    %1091 = vmatprep.subr.mxu0 0.0
    %1092 = vmatpush1.msra.mxu0 0.0
    %1093 = vmatprep.subr.mxu0 0.0
    %1094 = vmatpush1.msra.mxu0 0.0
    %1095 = vmatprep.subr.mxu0 0.0
    %1096 = vmatpush1.msra.mxu0 0.0
    %1097 = vmatprep.subr.mxu0 0.0
    %1098 = vmatpush1.msra.mxu0 0.0
    %1099 = vmatprep.subr.mxu0 0.0
    %1100 = vmatpush1.msra.mxu0 0.0
    %1101 = vmatprep.subr.mxu0 0.0
    %1102 = vmatpush1.msra.mxu0 0.0
    %1103 = vmatprep.subr.mxu0 0.0
    %1104 = vmatpush1.msra.mxu0 0.0
    %1105 = vmatprep.subr.mxu0 0.0
    %1106 = vmatpush1.msra.mxu0 0.0
    %1107 = vmatprep.subr.mxu0 0.0
    %1108 = vmatpush1.msra.mxu0 0.0
    %1109 = vmatprep.subr.mxu0 0.0
    %1110 = vmatpush1.msra.mxu0 0.0
    %1111 = vmatprep.mubr.f32.mxu0 0.0
    %1112 = vmatmul.mubr.f32.gmra.mrb[0].mxu0 %v972
    %v1113 = vpop.f32.mrb[0].mxu0
    %v1114 = vadd.f32 %v1044, %v1113
    %v1115 = vpop.f32.mrb[0].mxu0
    %1116 = vdwg.mxu0
    %v1117 = vadd.f32 %v1114, %v296
    %v1118 = vxor.u32 %v1117, 2147483648
    %v1119 = vmul.f32 %v1118, 1.442695
    %v1120 = vpow.pop %v1119
    %v1121 = vadd.f32 %v1120, 1.0
    %v1122 = vrcp.pop %v1121
    %v1123 = vmul.f32 1.0, %v1122
    %v1124 = vtanh.pop %v1117
    %v1125 = vld [vmem:[#allocation3] sm:$0xff]
    %1127 = vrot.lane.b32.xlu0 %v1125, 32
    %v1128 = vpop.permute.xlu0 %1127
    %v1130 = vmul.f32 %v1123, %v1128
    %1132 = vrot.lane.b32.xlu0 %v1124, 64
    %v1133 = vpop.permute.xlu0 %1132
    %v1135 = vmul.f32 %v1123, %v1133
    %1137 = vrot.lane.b32.xlu0 %v1135, 32
    %v1138 = vpop.permute.xlu0 %1137
    %v1140 = vadd.f32 %v1130, %v1138
    %v1141 = vtanh.pop %v1140
    %1143 = vrot.lane.b32.xlu0 %v1141, 64
    %v1144 = vpop.permute.xlu0 %1143
    %v1146 = vmul.f32 %v1123, %v1144
    %1148 = vrot.lane.b32.xlu0 %v1140, 96
    %v1149 = vpop.permute.xlu0 %1148
    %1151 = vst.msk [vmem:[#allocation3] sm:$0xff] %vm148, %v1149
    %1153 = vrot.lane.b32.xlu0 %v1146, 32
    %v1154 = vpop.permute.xlu0 %1153
    %1156 = vst.msk [vmem:[#allocation2] sm:$0xff] %vm148, %v1154
    %s1157 = sadd.s32 %s145, 4
    %v1158 = vstv %s1157
    %vm1159 = vcmp.eq.s32.totalorder %v144, %v1158
    %v1160 = vld [vmem:[#allocation4] sm:$0xff]
    %v1161 = vsel %vm1159, 1, 0
    %1162 = vset.pattern.permute.xlu0 0
    %1163 = vperm.xlu0 %1162, %v1161
    %v1164 = vpop.permute.xlu0 %1163
    %vm1165 = vcmp.eq.s32.totalorder %v1164, 1
    %1167 = vrot.lane.b32.xlu0 %v1160, 96
    %v1168 = vpop.permute.xlu0 %1167
    %v1170 = vsel %vm1165, %v1146, %v1168
    %1172 = vrot.lane.b32.xlu0 %v1170, 32
    %v1173 = vpop.permute.xlu0 %1172
    %1175 = vst.msk [vmem:[#allocation4] sm:$0xff] %vm148, %v1173
    %s1176 = scalar_lea.vmem [#allocation5], 40
    %v1177 = vld [vmem:[%s1176] sm:$0xff]
    %v1178 = vld [vmem:[#allocation2] sm:$0xff]
    %v1180 = vsel %vm148, %v1178, 0
    %1182 = vmatprep.subr.mxu0 0.0
    %1183 = vmatpush1.msra.mxu0 %v138
    %1184 = vmatprep.subr.mxu0 0.0
    %1185 = vmatpush1.msra.mxu0 %v139
    %1186 = vmatprep.subr.mxu0 0.0
    %1187 = vmatpush1.msra.mxu0 %v140
    %1188 = vmatprep.subr.mxu0 0.0
    %1189 = vmatpush1.msra.mxu0 %v141
    %1190 = vmatprep.subr.mxu0 0.0
    %1191 = vmatpush1.msra.mxu0 0.0
    %1192 = vmatprep.subr.mxu0 0.0
    %1193 = vmatpush1.msra.mxu0 0.0
    %1194 = vmatprep.subr.mxu0 0.0
    %1195 = vmatpush1.msra.mxu0 0.0
    %1196 = vmatprep.subr.mxu0 0.0
    %1197 = vmatpush1.msra.mxu0 0.0
    %1198 = vmatprep.subr.mxu0 0.0
    %1199 = vmatpush1.msra.mxu0 0.0
    %1200 = vmatprep.subr.mxu0 0.0
    %1201 = vmatpush1.msra.mxu0 0.0
    %1202 = vmatprep.subr.mxu0 0.0
    %1203 = vmatpush1.msra.mxu0 0.0
    %1204 = vmatprep.subr.mxu0 0.0
    %1205 = vmatpush1.msra.mxu0 0.0
    %1206 = vmatprep.subr.mxu0 0.0
    %1207 = vmatpush1.msra.mxu0 0.0
    %1208 = vmatprep.subr.mxu0 0.0
    %1209 = vmatpush1.msra.mxu0 0.0
    %1210 = vmatprep.subr.mxu0 0.0
    %1211 = vmatpush1.msra.mxu0 0.0
    %1212 = vmatprep.subr.mxu0 0.0
    %1213 = vmatpush1.msra.mxu0 0.0
    %1214 = vmatprep.subr.mxu0 0.0
    %1215 = vmatpush1.msra.mxu0 0.0
    %1216 = vmatprep.subr.mxu0 0.0
    %1217 = vmatpush1.msra.mxu0 0.0
    %1218 = vmatprep.subr.mxu0 0.0
    %1219 = vmatpush1.msra.mxu0 0.0
    %1220 = vmatprep.subr.mxu0 0.0
    %1221 = vmatpush1.msra.mxu0 0.0
    %1222 = vmatprep.subr.mxu0 0.0
    %1223 = vmatpush1.msra.mxu0 0.0
    %1224 = vmatprep.subr.mxu0 0.0
    %1225 = vmatpush1.msra.mxu0 0.0
    %1226 = vmatprep.subr.mxu0 0.0
    %1227 = vmatpush1.msra.mxu0 0.0
    %1228 = vmatprep.subr.mxu0 0.0
    %1229 = vmatpush1.msra.mxu0 0.0
    %1230 = vmatprep.subr.mxu0 0.0
    %1231 = vmatpush1.msra.mxu0 0.0
    %1232 = vmatprep.subr.mxu0 0.0
    %1233 = vmatpush1.msra.mxu0 0.0
    %1234 = vmatprep.subr.mxu0 0.0
    %1235 = vmatpush1.msra.mxu0 0.0
    %1236 = vmatprep.subr.mxu0 0.0
    %1237 = vmatpush1.msra.mxu0 0.0
    %1238 = vmatprep.subr.mxu0 0.0
    %1239 = vmatpush1.msra.mxu0 0.0
    %1240 = vmatprep.subr.mxu0 0.0
    %1241 = vmatpush1.msra.mxu0 0.0
    %1242 = vmatprep.subr.mxu0 0.0
    %1243 = vmatpush1.msra.mxu0 0.0
    %1244 = vmatprep.subr.mxu0 0.0
    %1245 = vmatpush1.msra.mxu0 0.0
    %1246 = vmatprep.mubr.f32.mxu0 0.0
    %1247 = vmatmul.mubr.f32.gmra.mrb[0].mxu0 %v1180
    %v1248 = vpop.f32.mrb[0].mxu0
    %v1249 = vadd.f32 0.0, %v1248
    %v1250 = vpop.f32.mrb[0].mxu0
    %1251 = vdwg.mxu0
    %1252 = vmatprep.subr.mxu0 0.0
    %1253 = vmatpush1.msra.mxu0 %v122
    %1254 = vmatprep.subr.mxu0 0.0
    %1255 = vmatpush1.msra.mxu0 %v123
    %1256 = vmatprep.subr.mxu0 0.0
    %1257 = vmatpush1.msra.mxu0 %v124
    %1258 = vmatprep.subr.mxu0 0.0
    %1259 = vmatpush1.msra.mxu0 %v125
    %1260 = vmatprep.subr.mxu0 0.0
    %1261 = vmatpush1.msra.mxu0 %v126
    %1262 = vmatprep.subr.mxu0 0.0
    %1263 = vmatpush1.msra.mxu0 %v127
    %1264 = vmatprep.subr.mxu0 0.0
    %1265 = vmatpush1.msra.mxu0 %v128
    %1266 = vmatprep.subr.mxu0 0.0
    %1267 = vmatpush1.msra.mxu0 %v129
    %1268 = vmatprep.subr.mxu0 0.0
    %1269 = vmatpush1.msra.mxu0 %v130
    %1270 = vmatprep.subr.mxu0 0.0
    %1271 = vmatpush1.msra.mxu0 %v131
    %1272 = vmatprep.subr.mxu0 0.0
    %1273 = vmatpush1.msra.mxu0 %v132
    %1274 = vmatprep.subr.mxu0 0.0
    %1275 = vmatpush1.msra.mxu0 %v133
    %1276 = vmatprep.subr.mxu0 0.0
    %1277 = vmatpush1.msra.mxu0 %v134
    %1278 = vmatprep.subr.mxu0 0.0
    %1279 = vmatpush1.msra.mxu0 %v135
    %1280 = vmatprep.subr.mxu0 0.0
    %1281 = vmatpush1.msra.mxu0 %v136
    %1282 = vmatprep.subr.mxu0 0.0
    %1283 = vmatpush1.msra.mxu0 %v137
    %1284 = vmatprep.subr.mxu0 0.0
    %1285 = vmatpush1.msra.mxu0 0.0
    %1286 = vmatprep.subr.mxu0 0.0
    %1287 = vmatpush1.msra.mxu0 0.0
    %1288 = vmatprep.subr.mxu0 0.0
    %1289 = vmatpush1.msra.mxu0 0.0
    %1290 = vmatprep.subr.mxu0 0.0
    %1291 = vmatpush1.msra.mxu0 0.0
    %1292 = vmatprep.subr.mxu0 0.0
    %1293 = vmatpush1.msra.mxu0 0.0
    %1294 = vmatprep.subr.mxu0 0.0
    %1295 = vmatpush1.msra.mxu0 0.0
    %1296 = vmatprep.subr.mxu0 0.0
    %1297 = vmatpush1.msra.mxu0 0.0
    %1298 = vmatprep.subr.mxu0 0.0
    %1299 = vmatpush1.msra.mxu0 0.0
    %1300 = vmatprep.subr.mxu0 0.0
    %1301 = vmatpush1.msra.mxu0 0.0
    %1302 = vmatprep.subr.mxu0 0.0
    %1303 = vmatpush1.msra.mxu0 0.0
    %1304 = vmatprep.subr.mxu0 0.0
    %1305 = vmatpush1.msra.mxu0 0.0
    %1306 = vmatprep.subr.mxu0 0.0
    %1307 = vmatpush1.msra.mxu0 0.0
    %1308 = vmatprep.subr.mxu0 0.0
    %1309 = vmatpush1.msra.mxu0 0.0
    %1310 = vmatprep.subr.mxu0 0.0
    %1311 = vmatpush1.msra.mxu0 0.0
    %1312 = vmatprep.subr.mxu0 0.0
    %1313 = vmatpush1.msra.mxu0 0.0
    %1314 = vmatprep.subr.mxu0 0.0
    %1315 = vmatpush1.msra.mxu0 0.0
    %1316 = vmatprep.mubr.f32.mxu0 0.0
    %1317 = vmatmul.mubr.f32.gmra.mrb[0].mxu0 %v1177
    %v1318 = vpop.f32.mrb[0].mxu0
    %v1319 = vadd.f32 %v1249, %v1318
    %v1320 = vpop.f32.mrb[0].mxu0
    %1321 = vdwg.mxu0
    %v1322 = vadd.f32 %v1319, %v296
    %v1323 = vxor.u32 %v1322, 2147483648
    %v1324 = vmul.f32 %v1323, 1.442695
    %v1325 = vpow.pop %v1324
    %v1326 = vadd.f32 %v1325, 1.0
    %v1327 = vrcp.pop %v1326
    %v1328 = vmul.f32 1.0, %v1327
    %v1329 = vtanh.pop %v1322
    %v1330 = vld [vmem:[#allocation3] sm:$0xff]
    %1332 = vrot.lane.b32.xlu0 %v1330, 32
    %v1333 = vpop.permute.xlu0 %1332
    %v1335 = vmul.f32 %v1328, %v1333
    %1337 = vrot.lane.b32.xlu0 %v1329, 64
    %v1338 = vpop.permute.xlu0 %1337
    %v1340 = vmul.f32 %v1328, %v1338
    %1342 = vrot.lane.b32.xlu0 %v1340, 32
    %v1343 = vpop.permute.xlu0 %1342
    %v1345 = vadd.f32 %v1335, %v1343
    %v1346 = vtanh.pop %v1345
    %1348 = vrot.lane.b32.xlu0 %v1346, 64
    %v1349 = vpop.permute.xlu0 %1348
    %v1351 = vmul.f32 %v1328, %v1349
    %1353 = vrot.lane.b32.xlu0 %v1345, 96
    %v1354 = vpop.permute.xlu0 %1353
    %1356 = vst.msk [vmem:[#allocation3] sm:$0xff] %vm148, %v1354
    %1358 = vrot.lane.b32.xlu0 %v1351, 32
    %v1359 = vpop.permute.xlu0 %1358
    %1361 = vst.msk [vmem:[#allocation2] sm:$0xff] %vm148, %v1359
    %s1362 = sadd.s32 %s145, 5
    %v1363 = vstv %s1362
    %vm1364 = vcmp.eq.s32.totalorder %v144, %v1363
    %v1365 = vld [vmem:[#allocation4] sm:$0xff]
    %v1366 = vsel %vm1364, 1, 0
    %1367 = vset.pattern.permute.xlu0 0
    %1368 = vperm.xlu0 %1367, %v1366
    %v1369 = vpop.permute.xlu0 %1368
    %vm1370 = vcmp.eq.s32.totalorder %v1369, 1
    %1372 = vrot.lane.b32.xlu0 %v1365, 96
    %v1373 = vpop.permute.xlu0 %1372
    %v1375 = vsel %vm1370, %v1351, %v1373
    %1377 = vrot.lane.b32.xlu0 %v1375, 32
    %v1378 = vpop.permute.xlu0 %1377
    %1380 = vst.msk [vmem:[#allocation4] sm:$0xff] %vm148, %v1378
    %s1381 = scalar_lea.vmem [#allocation5], 48
    %v1382 = vld [vmem:[%s1381] sm:$0xff]
    %v1383 = vld [vmem:[#allocation2] sm:$0xff]
    %v1385 = vsel %vm148, %v1383, 0
    %1387 = vmatprep.subr.mxu0 0.0
    %1388 = vmatpush1.msra.mxu0 %v138
    %1389 = vmatprep.subr.mxu0 0.0
    %1390 = vmatpush1.msra.mxu0 %v139
    %1391 = vmatprep.subr.mxu0 0.0
    %1392 = vmatpush1.msra.mxu0 %v140
    %1393 = vmatprep.subr.mxu0 0.0
    %1394 = vmatpush1.msra.mxu0 %v141
    %1395 = vmatprep.subr.mxu0 0.0
    %1396 = vmatpush1.msra.mxu0 0.0
    %1397 = vmatprep.subr.mxu0 0.0
    %1398 = vmatpush1.msra.mxu0 0.0
    %1399 = vmatprep.subr.mxu0 0.0
    %1400 = vmatpush1.msra.mxu0 0.0
    %1401 = vmatprep.subr.mxu0 0.0
    %1402 = vmatpush1.msra.mxu0 0.0
    %1403 = vmatprep.subr.mxu0 0.0
    %1404 = vmatpush1.msra.mxu0 0.0
    %1405 = vmatprep.subr.mxu0 0.0
    %1406 = vmatpush1.msra.mxu0 0.0
    %1407 = vmatprep.subr.mxu0 0.0
    %1408 = vmatpush1.msra.mxu0 0.0
    %1409 = vmatprep.subr.mxu0 0.0
    %1410 = vmatpush1.msra.mxu0 0.0
    %1411 = vmatprep.subr.mxu0 0.0
    %1412 = vmatpush1.msra.mxu0 0.0
    %1413 = vmatprep.subr.mxu0 0.0
    %1414 = vmatpush1.msra.mxu0 0.0
    %1415 = vmatprep.subr.mxu0 0.0
    %1416 = vmatpush1.msra.mxu0 0.0
    %1417 = vmatprep.subr.mxu0 0.0
    %1418 = vmatpush1.msra.mxu0 0.0
    %1419 = vmatprep.subr.mxu0 0.0
    %1420 = vmatpush1.msra.mxu0 0.0
    %1421 = vmatprep.subr.mxu0 0.0
    %1422 = vmatpush1.msra.mxu0 0.0
    %1423 = vmatprep.subr.mxu0 0.0
    %1424 = vmatpush1.msra.mxu0 0.0
    %1425 = vmatprep.subr.mxu0 0.0
    %1426 = vmatpush1.msra.mxu0 0.0
    %1427 = vmatprep.subr.mxu0 0.0
    %1428 = vmatpush1.msra.mxu0 0.0
    %1429 = vmatprep.subr.mxu0 0.0
    %1430 = vmatpush1.msra.mxu0 0.0
    %1431 = vmatprep.subr.mxu0 0.0
    %1432 = vmatpush1.msra.mxu0 0.0
    %1433 = vmatprep.subr.mxu0 0.0
    %1434 = vmatpush1.msra.mxu0 0.0
    %1435 = vmatprep.subr.mxu0 0.0
    %1436 = vmatpush1.msra.mxu0 0.0
    %1437 = vmatprep.subr.mxu0 0.0
    %1438 = vmatpush1.msra.mxu0 0.0
    %1439 = vmatprep.subr.mxu0 0.0
    %1440 = vmatpush1.msra.mxu0 0.0
    %1441 = vmatprep.subr.mxu0 0.0
    %1442 = vmatpush1.msra.mxu0 0.0
    %1443 = vmatprep.subr.mxu0 0.0
    %1444 = vmatpush1.msra.mxu0 0.0
    %1445 = vmatprep.subr.mxu0 0.0
    %1446 = vmatpush1.msra.mxu0 0.0
    %1447 = vmatprep.subr.mxu0 0.0
    %1448 = vmatpush1.msra.mxu0 0.0
    %1449 = vmatprep.subr.mxu0 0.0
    %1450 = vmatpush1.msra.mxu0 0.0
    %1451 = vmatprep.mubr.f32.mxu0 0.0
    %1452 = vmatmul.mubr.f32.gmra.mrb[0].mxu0 %v1385
    %v1453 = vpop.f32.mrb[0].mxu0
    %v1454 = vadd.f32 0.0, %v1453
    %v1455 = vpop.f32.mrb[0].mxu0
    %1456 = vdwg.mxu0
    %1457 = vmatprep.subr.mxu0 0.0
    %1458 = vmatpush1.msra.mxu0 %v122
    %1459 = vmatprep.subr.mxu0 0.0
    %1460 = vmatpush1.msra.mxu0 %v123
    %1461 = vmatprep.subr.mxu0 0.0
    %1462 = vmatpush1.msra.mxu0 %v124
    %1463 = vmatprep.subr.mxu0 0.0
    %1464 = vmatpush1.msra.mxu0 %v125
    %1465 = vmatprep.subr.mxu0 0.0
    %1466 = vmatpush1.msra.mxu0 %v126
    %1467 = vmatprep.subr.mxu0 0.0
    %1468 = vmatpush1.msra.mxu0 %v127
    %1469 = vmatprep.subr.mxu0 0.0
    %1470 = vmatpush1.msra.mxu0 %v128
    %1471 = vmatprep.subr.mxu0 0.0
    %1472 = vmatpush1.msra.mxu0 %v129
    %1473 = vmatprep.subr.mxu0 0.0
    %1474 = vmatpush1.msra.mxu0 %v130
    %1475 = vmatprep.subr.mxu0 0.0
    %1476 = vmatpush1.msra.mxu0 %v131
    %1477 = vmatprep.subr.mxu0 0.0
    %1478 = vmatpush1.msra.mxu0 %v132
    %1479 = vmatprep.subr.mxu0 0.0
    %1480 = vmatpush1.msra.mxu0 %v133
    %1481 = vmatprep.subr.mxu0 0.0
    %1482 = vmatpush1.msra.mxu0 %v134
    %1483 = vmatprep.subr.mxu0 0.0
    %1484 = vmatpush1.msra.mxu0 %v135
    %1485 = vmatprep.subr.mxu0 0.0
    %1486 = vmatpush1.msra.mxu0 %v136
    %1487 = vmatprep.subr.mxu0 0.0
    %1488 = vmatpush1.msra.mxu0 %v137
    %1489 = vmatprep.subr.mxu0 0.0
    %1490 = vmatpush1.msra.mxu0 0.0
    %1491 = vmatprep.subr.mxu0 0.0
    %1492 = vmatpush1.msra.mxu0 0.0
    %1493 = vmatprep.subr.mxu0 0.0
    %1494 = vmatpush1.msra.mxu0 0.0
    %1495 = vmatprep.subr.mxu0 0.0
    %1496 = vmatpush1.msra.mxu0 0.0
    %1497 = vmatprep.subr.mxu0 0.0
    %1498 = vmatpush1.msra.mxu0 0.0
    %1499 = vmatprep.subr.mxu0 0.0
    %1500 = vmatpush1.msra.mxu0 0.0
    %1501 = vmatprep.subr.mxu0 0.0
    %1502 = vmatpush1.msra.mxu0 0.0
    %1503 = vmatprep.subr.mxu0 0.0
    %1504 = vmatpush1.msra.mxu0 0.0
    %1505 = vmatprep.subr.mxu0 0.0
    %1506 = vmatpush1.msra.mxu0 0.0
    %1507 = vmatprep.subr.mxu0 0.0
    %1508 = vmatpush1.msra.mxu0 0.0
    %1509 = vmatprep.subr.mxu0 0.0
    %1510 = vmatpush1.msra.mxu0 0.0
    %1511 = vmatprep.subr.mxu0 0.0
    %1512 = vmatpush1.msra.mxu0 0.0
    %1513 = vmatprep.subr.mxu0 0.0
    %1514 = vmatpush1.msra.mxu0 0.0
    %1515 = vmatprep.subr.mxu0 0.0
    %1516 = vmatpush1.msra.mxu0 0.0
    %1517 = vmatprep.subr.mxu0 0.0
    %1518 = vmatpush1.msra.mxu0 0.0
    %1519 = vmatprep.subr.mxu0 0.0
    %1520 = vmatpush1.msra.mxu0 0.0
    %1521 = vmatprep.mubr.f32.mxu0 0.0
    %1522 = vmatmul.mubr.f32.gmra.mrb[0].mxu0 %v1382
    %v1523 = vpop.f32.mrb[0].mxu0
    %v1524 = vadd.f32 %v1454, %v1523
    %v1525 = vpop.f32.mrb[0].mxu0
    %1526 = vdwg.mxu0
    %v1527 = vadd.f32 %v1524, %v296
    %v1528 = vxor.u32 %v1527, 2147483648
    %v1529 = vmul.f32 %v1528, 1.442695
    %v1530 = vpow.pop %v1529
    %v1531 = vadd.f32 %v1530, 1.0
    %v1532 = vrcp.pop %v1531
    %v1533 = vmul.f32 1.0, %v1532
    %v1534 = vtanh.pop %v1527
    %v1535 = vld [vmem:[#allocation3] sm:$0xff]
    %1537 = vrot.lane.b32.xlu0 %v1535, 32
    %v1538 = vpop.permute.xlu0 %1537
    %v1540 = vmul.f32 %v1533, %v1538
    %1542 = vrot.lane.b32.xlu0 %v1534, 64
    %v1543 = vpop.permute.xlu0 %1542
    %v1545 = vmul.f32 %v1533, %v1543
    %1547 = vrot.lane.b32.xlu0 %v1545, 32
    %v1548 = vpop.permute.xlu0 %1547
    %v1550 = vadd.f32 %v1540, %v1548
    %v1551 = vtanh.pop %v1550
    %1553 = vrot.lane.b32.xlu0 %v1551, 64
    %v1554 = vpop.permute.xlu0 %1553
    %v1556 = vmul.f32 %v1533, %v1554
    %1558 = vrot.lane.b32.xlu0 %v1550, 96
    %v1559 = vpop.permute.xlu0 %1558
    %1561 = vst.msk [vmem:[#allocation3] sm:$0xff] %vm148, %v1559
    %1563 = vrot.lane.b32.xlu0 %v1556, 32
    %v1564 = vpop.permute.xlu0 %1563
    %1566 = vst.msk [vmem:[#allocation2] sm:$0xff] %vm148, %v1564
    %s1567 = sadd.s32 %s145, 6
    %v1568 = vstv %s1567
    %vm1569 = vcmp.eq.s32.totalorder %v144, %v1568
    %v1570 = vld [vmem:[#allocation4] sm:$0xff]
    %v1571 = vsel %vm1569, 1, 0
    %1572 = vset.pattern.permute.xlu0 0
    %1573 = vperm.xlu0 %1572, %v1571
    %v1574 = vpop.permute.xlu0 %1573
    %vm1575 = vcmp.eq.s32.totalorder %v1574, 1
    %1577 = vrot.lane.b32.xlu0 %v1570, 96
    %v1578 = vpop.permute.xlu0 %1577
    %v1580 = vsel %vm1575, %v1556, %v1578
    %1582 = vrot.lane.b32.xlu0 %v1580, 32
    %v1583 = vpop.permute.xlu0 %1582
    %1585 = vst.msk [vmem:[#allocation4] sm:$0xff] %vm148, %v1583
    %s1586 = scalar_lea.vmem [#allocation5], 56
    %v1587 = vld [vmem:[%s1586] sm:$0xff]
    %v1588 = vld [vmem:[#allocation2] sm:$0xff]
    %v1590 = vsel %vm148, %v1588, 0
    %1592 = vmatprep.subr.mxu0 0.0
    %1593 = vmatpush1.msra.mxu0 %v138
    %1594 = vmatprep.subr.mxu0 0.0
    %1595 = vmatpush1.msra.mxu0 %v139
    %1596 = vmatprep.subr.mxu0 0.0
    %1597 = vmatpush1.msra.mxu0 %v140
    %1598 = vmatprep.subr.mxu0 0.0
    %1599 = vmatpush1.msra.mxu0 %v141
    %1600 = vmatprep.subr.mxu0 0.0
    %1601 = vmatpush1.msra.mxu0 0.0
    %1602 = vmatprep.subr.mxu0 0.0
    %1603 = vmatpush1.msra.mxu0 0.0
    %1604 = vmatprep.subr.mxu0 0.0
    %1605 = vmatpush1.msra.mxu0 0.0
    %1606 = vmatprep.subr.mxu0 0.0
    %1607 = vmatpush1.msra.mxu0 0.0
    %1608 = vmatprep.subr.mxu0 0.0
    %1609 = vmatpush1.msra.mxu0 0.0
    %1610 = vmatprep.subr.mxu0 0.0
    %1611 = vmatpush1.msra.mxu0 0.0
    %1612 = vmatprep.subr.mxu0 0.0
    %1613 = vmatpush1.msra.mxu0 0.0
    %1614 = vmatprep.subr.mxu0 0.0
    %1615 = vmatpush1.msra.mxu0 0.0
    %1616 = vmatprep.subr.mxu0 0.0
    %1617 = vmatpush1.msra.mxu0 0.0
    %1618 = vmatprep.subr.mxu0 0.0
    %1619 = vmatpush1.msra.mxu0 0.0
    %1620 = vmatprep.subr.mxu0 0.0
    %1621 = vmatpush1.msra.mxu0 0.0
    %1622 = vmatprep.subr.mxu0 0.0
    %1623 = vmatpush1.msra.mxu0 0.0
    %1624 = vmatprep.subr.mxu0 0.0
    %1625 = vmatpush1.msra.mxu0 0.0
    %1626 = vmatprep.subr.mxu0 0.0
    %1627 = vmatpush1.msra.mxu0 0.0
    %1628 = vmatprep.subr.mxu0 0.0
    %1629 = vmatpush1.msra.mxu0 0.0
    %1630 = vmatprep.subr.mxu0 0.0
    %1631 = vmatpush1.msra.mxu0 0.0
    %1632 = vmatprep.subr.mxu0 0.0
    %1633 = vmatpush1.msra.mxu0 0.0
    %1634 = vmatprep.subr.mxu0 0.0
    %1635 = vmatpush1.msra.mxu0 0.0
    %1636 = vmatprep.subr.mxu0 0.0
    %1637 = vmatpush1.msra.mxu0 0.0
    %1638 = vmatprep.subr.mxu0 0.0
    %1639 = vmatpush1.msra.mxu0 0.0
    %1640 = vmatprep.subr.mxu0 0.0
    %1641 = vmatpush1.msra.mxu0 0.0
    %1642 = vmatprep.subr.mxu0 0.0
    %1643 = vmatpush1.msra.mxu0 0.0
    %1644 = vmatprep.subr.mxu0 0.0
    %1645 = vmatpush1.msra.mxu0 0.0
    %1646 = vmatprep.subr.mxu0 0.0
    %1647 = vmatpush1.msra.mxu0 0.0
    %1648 = vmatprep.subr.mxu0 0.0
    %1649 = vmatpush1.msra.mxu0 0.0
    %1650 = vmatprep.subr.mxu0 0.0
    %1651 = vmatpush1.msra.mxu0 0.0
    %1652 = vmatprep.subr.mxu0 0.0
    %1653 = vmatpush1.msra.mxu0 0.0
    %1654 = vmatprep.subr.mxu0 0.0
    %1655 = vmatpush1.msra.mxu0 0.0
    %1656 = vmatprep.mubr.f32.mxu0 0.0
    %1657 = vmatmul.mubr.f32.gmra.mrb[0].mxu0 %v1590
    %v1658 = vpop.f32.mrb[0].mxu0
    %v1659 = vadd.f32 0.0, %v1658
    %v1660 = vpop.f32.mrb[0].mxu0
    %1661 = vdwg.mxu0
    %1662 = vmatprep.subr.mxu0 0.0
    %1663 = vmatpush1.msra.mxu0 %v122
    %1664 = vmatprep.subr.mxu0 0.0
    %1665 = vmatpush1.msra.mxu0 %v123
    %1666 = vmatprep.subr.mxu0 0.0
    %1667 = vmatpush1.msra.mxu0 %v124
    %1668 = vmatprep.subr.mxu0 0.0
    %1669 = vmatpush1.msra.mxu0 %v125
    %1670 = vmatprep.subr.mxu0 0.0
    %1671 = vmatpush1.msra.mxu0 %v126
    %1672 = vmatprep.subr.mxu0 0.0
    %1673 = vmatpush1.msra.mxu0 %v127
    %1674 = vmatprep.subr.mxu0 0.0
    %1675 = vmatpush1.msra.mxu0 %v128
    %1676 = vmatprep.subr.mxu0 0.0
    %1677 = vmatpush1.msra.mxu0 %v129
    %1678 = vmatprep.subr.mxu0 0.0
    %1679 = vmatpush1.msra.mxu0 %v130
    %1680 = vmatprep.subr.mxu0 0.0
    %1681 = vmatpush1.msra.mxu0 %v131
    %1682 = vmatprep.subr.mxu0 0.0
    %1683 = vmatpush1.msra.mxu0 %v132
    %1684 = vmatprep.subr.mxu0 0.0
    %1685 = vmatpush1.msra.mxu0 %v133
    %1686 = vmatprep.subr.mxu0 0.0
    %1687 = vmatpush1.msra.mxu0 %v134
    %1688 = vmatprep.subr.mxu0 0.0
    %1689 = vmatpush1.msra.mxu0 %v135
    %1690 = vmatprep.subr.mxu0 0.0
    %1691 = vmatpush1.msra.mxu0 %v136
    %1692 = vmatprep.subr.mxu0 0.0
    %1693 = vmatpush1.msra.mxu0 %v137
    %1694 = vmatprep.subr.mxu0 0.0
    %1695 = vmatpush1.msra.mxu0 0.0
    %1696 = vmatprep.subr.mxu0 0.0
    %1697 = vmatpush1.msra.mxu0 0.0
    %1698 = vmatprep.subr.mxu0 0.0
    %1699 = vmatpush1.msra.mxu0 0.0
    %1700 = vmatprep.subr.mxu0 0.0
    %1701 = vmatpush1.msra.mxu0 0.0
    %1702 = vmatprep.subr.mxu0 0.0
    %1703 = vmatpush1.msra.mxu0 0.0
    %1704 = vmatprep.subr.mxu0 0.0
    %1705 = vmatpush1.msra.mxu0 0.0
    %1706 = vmatprep.subr.mxu0 0.0
    %1707 = vmatpush1.msra.mxu0 0.0
    %1708 = vmatprep.subr.mxu0 0.0
    %1709 = vmatpush1.msra.mxu0 0.0
    %1710 = vmatprep.subr.mxu0 0.0
    %1711 = vmatpush1.msra.mxu0 0.0
    %1712 = vmatprep.subr.mxu0 0.0
    %1713 = vmatpush1.msra.mxu0 0.0
    %1714 = vmatprep.subr.mxu0 0.0
    %1715 = vmatpush1.msra.mxu0 0.0
    %1716 = vmatprep.subr.mxu0 0.0
    %1717 = vmatpush1.msra.mxu0 0.0
    %1718 = vmatprep.subr.mxu0 0.0
    %1719 = vmatpush1.msra.mxu0 0.0
    %1720 = vmatprep.subr.mxu0 0.0
    %1721 = vmatpush1.msra.mxu0 0.0
    %1722 = vmatprep.subr.mxu0 0.0
    %1723 = vmatpush1.msra.mxu0 0.0
    %1724 = vmatprep.subr.mxu0 0.0
    %1725 = vmatpush1.msra.mxu0 0.0
    %1726 = vmatprep.mubr.f32.mxu0 0.0
    %1727 = vmatmul.mubr.f32.gmra.mrb[0].mxu0 %v1587
    %v1728 = vpop.f32.mrb[0].mxu0
    %v1729 = vadd.f32 %v1659, %v1728
    %v1730 = vpop.f32.mrb[0].mxu0
    %1731 = vdwg.mxu0
    %v1732 = vadd.f32 %v1729, %v296
    %v1733 = vxor.u32 %v1732, 2147483648
    %v1734 = vmul.f32 %v1733, 1.442695
    %v1735 = vpow.pop %v1734
    %v1736 = vadd.f32 %v1735, 1.0
    %v1737 = vrcp.pop %v1736
    %v1738 = vmul.f32 1.0, %v1737
    %v1739 = vtanh.pop %v1732
    %v1740 = vld [vmem:[#allocation3] sm:$0xff]
    %1742 = vrot.lane.b32.xlu0 %v1740, 32
    %v1743 = vpop.permute.xlu0 %1742
    %v1745 = vmul.f32 %v1738, %v1743
    %1747 = vrot.lane.b32.xlu0 %v1739, 64
    %v1748 = vpop.permute.xlu0 %1747
    %v1750 = vmul.f32 %v1738, %v1748
    %1752 = vrot.lane.b32.xlu0 %v1750, 32
    %v1753 = vpop.permute.xlu0 %1752
    %v1755 = vadd.f32 %v1745, %v1753
    %v1756 = vtanh.pop %v1755
    %1758 = vrot.lane.b32.xlu0 %v1756, 64
    %v1759 = vpop.permute.xlu0 %1758
    %v1761 = vmul.f32 %v1738, %v1759
    %1763 = vrot.lane.b32.xlu0 %v1755, 96
    %v1764 = vpop.permute.xlu0 %1763
    %1766 = vst.msk [vmem:[#allocation3] sm:$0xff] %vm148, %v1764
    %1768 = vrot.lane.b32.xlu0 %v1761, 32
    %v1769 = vpop.permute.xlu0 %1768
    %1771 = vst.msk [vmem:[#allocation2] sm:$0xff] %vm148, %v1769
    %s1772 = sadd.s32 %s145, 7
    %v1773 = vstv %s1772
    %vm1774 = vcmp.eq.s32.totalorder %v144, %v1773
    %v1775 = vld [vmem:[#allocation4] sm:$0xff]
    %v1776 = vsel %vm1774, 1, 0
    %1777 = vset.pattern.permute.xlu0 0
    %1778 = vperm.xlu0 %1777, %v1776
    %v1779 = vpop.permute.xlu0 %1778
    %vm1780 = vcmp.eq.s32.totalorder %v1779, 1
    %1782 = vrot.lane.b32.xlu0 %v1775, 96
    %v1783 = vpop.permute.xlu0 %1782
    %v1785 = vsel %vm1780, %v1761, %v1783
    %1787 = vrot.lane.b32.xlu0 %v1785, 32
    %v1788 = vpop.permute.xlu0 %1787
    %1790 = vst.msk [vmem:[#allocation4] sm:$0xff] %vm148, %v1788
    // Predicated region
    $region62: #{tpu_custom_call.1} parent=1 // pred_check
      %p1791 = pneg %p114
    $region63: #{tpu_custom_call.1} parent=1 // pred_check_branch
      %1793 = sbr.rel (%p1791) target = $region65
    $region64: #{tpu_custom_call.1} parent=1 // pred_region
      %v1794 = vld [vmem:[#allocation13] sm:$0xff]
      %v1795 = vld [vmem:[#allocation14] sm:$0xff]
      %v1796 = vld [vmem:[#allocation4] sm:$0xff]
      %v1797 = vmul.f32 %v1794, %v1796
      %v1798 = vmul.f32 %v1795, %v1794
      %v1799 = vadd.f32 %v1797, %v1798
      %vm1800 = vcmask 64512
      %v1801 = vsel %vm1800, %v1799, 0.0
      %v1802 = vrot.slane %v1801, 4
      %v1803 = vadd.f32 %v1801, %v1802
      %v1804 = vrot.slane %v1803, 2
      %v1805 = vadd.f32 %v1803, %v1804
      %v1806 = vrot.slane %v1805, 1
      %v1807 = vadd.f32 %v1805, %v1806
      %vm1808 = vcmask 57344
      %1809 = vst.msk [vmem:[#allocation17] sm:$0x1] %vm1808, %v1807
    $region65: #{tpu_custom_call.1} parent=1 // pred_fallthru
      _
    // Predicated region
    $region66: #{tpu_custom_call.1} parent=1 // pred_check
      _
    $region67: #{tpu_custom_call.1} parent=1 // pred_check_branch
      %1811 = sbr.rel (0) target = $region69
    $region68: #{tpu_custom_call.1} parent=1 // pred_region
      %s1813 = ssub.s32 16, 16
      %1814 = vsyncadd [#allocation7], %s1813
      %s1816 = sshll.u32 [#allocation17], 4
      %s1817 = int_to_ptr.vmem [resolvable:$true] %s1816
      %1819 = dma.vmem_to_hbm [thread:$0]  %s1817, 16, %s7, [#allocation7]
    $region69: #{tpu_custom_call.1} parent=1 // pred_fallthru
      _
    // Predicated region
    $region70: #{tpu_custom_call.1} parent=1 // pred_check
      _
    $region71: #{tpu_custom_call.1} parent=1 // pred_check_branch
      %1821 = sbr.rel (0) target = $region73
    $region72: #{tpu_custom_call.1} parent=1 // pred_region
      %1822 = dma.done [#allocation7], 16
    $region73: #{tpu_custom_call.1} parent=1 // pred_fallthru
      _
    %1823 = vsyncpa [#allocation6], 1
    %1824 = vsyncpa [#allocation9], 1
    %1825 = vsyncpa [#allocation12], 1
    %1826 = vsyncpa [#allocation15], 1
    %1827 = vsyncpa [#allocation7], 1

</llo_original>
